<compile_context>
chip_gen: v5e
topology: v5e:2x2
jax: 0.10.0
libtpu: 0.0.40
codegen_flags: <defaults>
</compile_context>

<pallas_src>
import jax
import jax.numpy as jnp
from jax.experimental import pallas as pl
from jax.experimental.pallas import tpu as pltpu

IMG_SIZE = 28
N_CHANNEL = 1

H1 = 512
H2 = 256
OUT_PAD = 128          # final (256 -> 1) matmul padded to 128 lanes (MXU only)
TB_MAX = 2048          # max batch tile (multiple of 8)


def _discriminator_kernel(x_ref, w1_ref, b1_ref, w2_ref, b2_ref,
                          w3_ref, b3_ref, o_ref):
    # x tile: (TB, 784). Cast to bf16 for the MXU (no-op if already bf16).
    x = x_ref[...].astype(jnp.bfloat16)

    # Linear(784, 512) + LeakyReLU(0.2)  (f32 accumulate, bf16 activation)
    h1 = jnp.dot(x, w1_ref[...], preferred_element_type=jnp.float32)
    h1 = (h1 + b1_ref[...]).astype(jnp.bfloat16)             # (TB, 512)
    h1 = jnp.maximum(h1, 0.2 * h1)

    # Linear(512, 256) + LeakyReLU(0.2)
    h2 = jnp.dot(h1, w2_ref[...], preferred_element_type=jnp.float32)
    h2 = (h2 + b2_ref[...]).astype(jnp.bfloat16)              # (TB, 256)
    h2 = jnp.maximum(h2, 0.2 * h2)

    # Linear(256, 1): MXU tile padded to 128 lanes, but only column 0 is real.
    h3 = jnp.dot(h2, w3_ref[...], preferred_element_type=jnp.float32)
    z = h3[:, :1] + b3_ref[...]                               # (TB, 1) f32

    # Sigmoid on the kept column only: 1 / (1 + exp(-z)) via EUP recip.
    o_ref[...] = pl.reciprocal(1.0 + jnp.exp(-z), approx=True)


def _round_up(n, m):
    return ((n + m - 1) // m) * m


def _pick_tb(B, tb_max):
    """Batch tile: legal (mult of 8 or == B) and >=2 grid steps when B > 8."""
    if B <= 8:
        return B                              # single full-dim block
    return min(tb_max, _round_up(pl.cdiv(B, 2), 8))


def discriminator_forward(img, packed_params, *, tb_max=TB_MAX):
    """img: (B, C, H, W) float32 or bfloat16 -> (B, 1) float32.

    Feeding bf16 activations (produced as bf16 upstream, not via a standalone
    cast) halves the dominant HBM stream on v6e/v7x.
    """
    w1, b1, w2, b2, w3p, b3 = packed_params
    B = img.shape[0]
    x = img.reshape(B, -1)                                    # (B, 784)
    K = x.shape[1]

    TB = _pick_tb(B, tb_max)
    grid = (pl.cdiv(B, TB),)

    def const_spec(a):  # weights/biases: whole array, VMEM-resident all steps
        return pl.BlockSpec(a.shape, lambda i: (0, 0))

    out = pl.pallas_call(
        _discriminator_kernel,
        out_shape=jax.ShapeDtypeStruct((B, 1), jnp.float32),
        grid=grid,
        in_specs=[pl.BlockSpec((TB, K), lambda i: (i, 0)),
                  const_spec(w1), const_spec(b1),
                  const_spec(w2), const_spec(b2),
                  const_spec(w3p), const_spec(b3)],
        out_specs=pl.BlockSpec((TB, 1), lambda i: (i, 0)),
        compiler_params=pltpu.CompilerParams(
            dimension_semantics=("parallel",),
            vmem_limit_bytes=48 * 1024 * 1024),
    )(x, w1, b1, w2, b2, w3p, b3)

    return out                                                # (B, 1)


def init_params(key, n_channel=N_CHANNEL, img_size=IMG_SIZE):
    """PyTorch nn.Linear default init (U[-1/sqrt(in), 1/sqrt(in)]), f32.

    Weights stored as (in, out) so the kernel computes x @ W + b (equivalent
    to PyTorch's x @ W.T + b with W stored as (out, in)); biases as (1, out).
    """
    dims = [n_channel * img_size ** 2, H1, H2, 1]
    params = []
    for fan_in, fan_out in zip(dims[:-1], dims[1:]):
        key, kw, kb = jax.random.split(key, 3)
        bound = 1.0 / (fan_in ** 0.5)
        w = jax.random.uniform(kw, (fan_in, fan_out), jnp.float32, -bound, bound)
        b = jax.random.uniform(kb, (1, fan_out), jnp.float32, -bound, bound)
        params.extend([w, b])
    return tuple(params)


def pack_params(params):
    """One-time packing: bf16 weights (halved HBM/VMEM footprint), f32 biases,
    final (256, 1) weight zero-padded to (256, 128) for a lane-dense MXU tile.
    The final bias stays a (1, 1) f32 (only the real column is computed)."""
    w1, b1, w2, b2, w3, b3 = params
    w3p = jnp.zeros((H2, OUT_PAD), jnp.float32).at[:, :1].set(w3)
    return (w1.astype(jnp.bfloat16), b1,
            w2.astype(jnp.bfloat16), b2,
            w3p.astype(jnp.bfloat16), b3)


def _reference_forward_bf16(img, packed_params):
    """Pure-JAX mirror of the kernel's mixed-precision math."""
    w1, b1, w2, b2, w3p, b3 = packed_params
    x = img.reshape(img.shape[0], -1).astype(jnp.bfloat16)
    h1 = jnp.dot(x, w1, preferred_element_type=jnp.float32) + b1
    h1 = h1.astype(jnp.bfloat16)
    h1 = jnp.maximum(h1, 0.2 * h1)
    h2 = jnp.dot(h1, w2, preferred_element_type=jnp.float32) + b2
    h2 = h2.astype(jnp.bfloat16)
    h2 = jnp.maximum(h2, 0.2 * h2)
    z = jnp.dot(h2, w3p, preferred_element_type=jnp.float32)[:, :1] + b3
    return jax.nn.sigmoid(z)


def _reference_forward_f32(img, params):
    """Full-f32 PyTorch-equivalent reference (semantics check)."""
    w1, b1, w2, b2, w3, b3 = params
    x = img.reshape(img.shape[0], -1).astype(jnp.float32)
    h1 = x @ w1 + b1
    h1 = jnp.where(h1 > 0, h1, 0.2 * h1)
    h2 = h1 @ w2 + b2
    h2 = jnp.where(h2 > 0, h2, 0.2 * h2)
    return jax.nn.sigmoid(h2 @ w3 + b3)


if __name__ == "__main__":
    key = jax.random.PRNGKey(0)
    key_p, key_x, key_y = jax.random.split(key, 3)

    params = init_params(key_p)
    packed = pack_params(params)      # packed once, reused across calls

    # ---- Test 1: small f32 batch, module-consistent shape (2, 1, 28, 28) ----
    img = jax.random.normal(key_x, (2, N_CHANNEL, IMG_SIZE, IMG_SIZE),
                            jnp.float32)
    out = jax.block_until_ready(discriminator_forward(img, packed))
    assert out.shape == (2, 1), out.shape

    ref_bf16 = _reference_forward_bf16(img, packed)
    assert jnp.allclose(out, ref_bf16, atol=1e-2, rtol=1e-2), \
        "mismatch vs bf16 reference (f32 input)"

    ref_f32 = _reference_forward_f32(img, params)
    assert jnp.allclose(out, ref_f32, atol=5e-2, rtol=5e-2), \
        "mismatch vs f32 reference"

    # ---- Test 2: bf16 activations from the producer, B=12 (grid of 2 tiles,
    #      ragged last tile) exercises the megacore / bf16-input path ----------
    img_bf16 = jax.random.normal(key_y, (12, N_CHANNEL, IMG_SIZE, IMG_SIZE),
                                 jnp.bfloat16)
    out2 = jax.block_until_ready(discriminator_forward(img_bf16, packed))
    assert out2.shape == (12, 1), out2.shape
    ref2 = _reference_forward_bf16(img_bf16, packed)
    assert jnp.allclose(out2, ref2, atol=1e-2, rtol=1e-2), \
        "mismatch vs bf16 reference (bf16 input, 2 grid steps)"

    print("KERNEL_OK")
</pallas_src>

<mosaic_0001>
module attributes {stable_mosaic.version = 11 : i64} {
  func.func @_discriminator_kernel(%arg0: i32, %arg1: memref<2x784xf32, #tpu.memory_space<vmem>>, %arg2: memref<784x512xbf16, #tpu.memory_space<vmem>>, %arg3: memref<1x512xf32, #tpu.memory_space<vmem>>, %arg4: memref<512x256xbf16, #tpu.memory_space<vmem>>, %arg5: memref<1x256xf32, #tpu.memory_space<vmem>>, %arg6: memref<256x128xbf16, #tpu.memory_space<vmem>>, %arg7: memref<1x1xf32, #tpu.memory_space<vmem>>, %arg8: memref<2x1xf32, #tpu.memory_space<vmem>>) attributes {dimension_semantics = [#tpu.dimension_semantics<parallel>], iteration_bounds = array<i64: 1>, scalar_prefetch = 0 : i64, scratch_operands = 0 : i64, tpu.core_type = #tpu.core_type<tc>, window_params = [{transform_indices = @transform_0, window_bounds = array<i64: 2, 784>}, {pipeline_mode = #tpu.pipeline_mode<synchronous>, transform_indices = @transform_1, window_bounds = array<i64: 784, 512>}, {pipeline_mode = #tpu.pipeline_mode<synchronous>, transform_indices = @transform_2, window_bounds = array<i64: 1, 512>}, {pipeline_mode = #tpu.pipeline_mode<synchronous>, transform_indices = @transform_3, window_bounds = array<i64: 512, 256>}, {pipeline_mode = #tpu.pipeline_mode<synchronous>, transform_indices = @transform_4, window_bounds = array<i64: 1, 256>}, {pipeline_mode = #tpu.pipeline_mode<synchronous>, transform_indices = @transform_5, window_bounds = array<i64: 256, 128>}, {pipeline_mode = #tpu.pipeline_mode<synchronous>, transform_indices = @transform_6, window_bounds = array<i64: 1, 1>}, {transform_indices = @transform_7, window_bounds = array<i64: 2, 1>}]} {
    %c0 = arith.constant 0 : index
    %c0_0 = arith.constant 0 : index
    %0 = vector.load %arg1[%c0, %c0_0] : memref<2x784xf32, #tpu.memory_space<vmem>>, vector<2x784xf32>
    %1 = arith.truncf %0 : vector<2x784xf32> to vector<2x784xbf16>
    %c0_1 = arith.constant 0 : index
    %c0_2 = arith.constant 0 : index
    %2 = vector.load %arg2[%c0_1, %c0_2] : memref<784x512xbf16, #tpu.memory_space<vmem>>, vector<784x512xbf16>
    %cst = arith.constant dense<0.000000e+00> : vector<2x512xf32>
    %3 = tpu.matmul %1, %2, %cst {dimension_numbers = #tpu.dot_dimension_numbers<[1], [0], [0], [1], [0, 0, 1, 1], [], []>} : vector<2x784xbf16>, vector<784x512xbf16>, vector<2x512xf32> -> vector<2x512xf32>
    %c0_3 = arith.constant 0 : index
    %c0_4 = arith.constant 0 : index
    %4 = vector.load %arg3[%c0_3, %c0_4] : memref<1x512xf32, #tpu.memory_space<vmem>>, vector<1x512xf32>
    %5 = vector.broadcast %4 : vector<1x512xf32> to vector<2x512xf32>
    %6 = arith.addf %3, %5 : vector<2x512xf32>
    %7 = arith.truncf %6 : vector<2x512xf32> to vector<2x512xbf16>
    %cst_5 = arith.constant 2.001950e-01 : bf16
    %8 = vector.broadcast %cst_5 : bf16 to vector<2x512xbf16>
    %9 = arith.mulf %8, %7 : vector<2x512xbf16>
    %10 = arith.maximumf %7, %9 : vector<2x512xbf16>
    %c0_6 = arith.constant 0 : index
    %c0_7 = arith.constant 0 : index
    %11 = vector.load %arg4[%c0_6, %c0_7] : memref<512x256xbf16, #tpu.memory_space<vmem>>, vector<512x256xbf16>
    %cst_8 = arith.constant dense<0.000000e+00> : vector<2x256xf32>
    %12 = tpu.matmul %10, %11, %cst_8 {dimension_numbers = #tpu.dot_dimension_numbers<[1], [0], [0], [1], [0, 0, 1, 1], [], []>} : vector<2x512xbf16>, vector<512x256xbf16>, vector<2x256xf32> -> vector<2x256xf32>
    %c0_9 = arith.constant 0 : index
    %c0_10 = arith.constant 0 : index
    %13 = vector.load %arg5[%c0_9, %c0_10] : memref<1x256xf32, #tpu.memory_space<vmem>>, vector<1x256xf32>
    %14 = vector.broadcast %13 : vector<1x256xf32> to vector<2x256xf32>
    %15 = arith.addf %12, %14 : vector<2x256xf32>
    %16 = arith.truncf %15 : vector<2x256xf32> to vector<2x256xbf16>
    %cst_11 = arith.constant 2.001950e-01 : bf16
    %17 = vector.broadcast %cst_11 : bf16 to vector<2x256xbf16>
    %18 = arith.mulf %17, %16 : vector<2x256xbf16>
    %19 = arith.maximumf %16, %18 : vector<2x256xbf16>
    %c0_12 = arith.constant 0 : index
    %c0_13 = arith.constant 0 : index
    %20 = vector.load %arg6[%c0_12, %c0_13] : memref<256x128xbf16, #tpu.memory_space<vmem>>, vector<256x128xbf16>
    %cst_14 = arith.constant dense<0.000000e+00> : vector<2x128xf32>
    %21 = tpu.matmul %19, %20, %cst_14 {dimension_numbers = #tpu.dot_dimension_numbers<[1], [0], [0], [1], [0, 0, 1, 1], [], []>} : vector<2x256xbf16>, vector<256x128xbf16>, vector<2x128xf32> -> vector<2x128xf32>
    %22 = vector.extract_strided_slice %21 {offsets = [0, 0], sizes = [2, 1], strides = [1, 1]} : vector<2x128xf32> to vector<2x1xf32>
    %c0_15 = arith.constant 0 : index
    %c0_16 = arith.constant 0 : index
    %23 = vector.load %arg7[%c0_15, %c0_16] : memref<1x1xf32, #tpu.memory_space<vmem>>, vector<1x1xf32>
    %24 = vector.broadcast %23 : vector<1x1xf32> to vector<2x1xf32>
    %25 = arith.addf %22, %24 : vector<2x1xf32>
    %cst_17 = arith.constant 0.000000e+00 : f32
    %26 = vector.broadcast %cst_17 : f32 to vector<2x1xf32>
    %27 = arith.subf %26, %25 : vector<2x1xf32>
    %28 = math.exp %27 : vector<2x1xf32>
    %cst_18 = arith.constant 1.000000e+00 : f32
    %29 = vector.broadcast %cst_18 : f32 to vector<2x1xf32>
    %30 = arith.addf %29, %28 : vector<2x1xf32>
    %31 = tpu.reciprocal %30 {approx = true} : vector<2x1xf32> -> vector<2x1xf32>
    %c0_19 = arith.constant 0 : index
    %c0_20 = arith.constant 0 : index
    %32 = vector.load %arg8[%c0_19, %c0_20] : memref<2x1xf32, #tpu.memory_space<vmem>>, vector<2x1xf32>
    tpu.vector_store %arg8[%c0_19, %c0_20], %31 {strides = array<i32>} : memref<2x1xf32, #tpu.memory_space<vmem>>, vector<2x1xf32>,
    return
  }
  func.func @transform_0(%arg0: i32) -> (i32, i32) {
    %c0_i32 = arith.constant 0 : i32
    %c0_i32_0 = arith.constant 0 : i32
    return %arg0, %c0_i32 : i32, i32
  }
  func.func @transform_1(%arg0: i32) -> (i32, i32) {
    %c0_i32 = arith.constant 0 : i32
    %c0_i32_0 = arith.constant 0 : i32
    %c0_i32_1 = arith.constant 0 : i32
    return %c0_i32, %c0_i32_0 : i32, i32
  }
  func.func @transform_2(%arg0: i32) -> (i32, i32) {
    %c0_i32 = arith.constant 0 : i32
    %c0_i32_0 = arith.constant 0 : i32
    %c0_i32_1 = arith.constant 0 : i32
    return %c0_i32, %c0_i32_0 : i32, i32
  }
  func.func @transform_3(%arg0: i32) -> (i32, i32) {
    %c0_i32 = arith.constant 0 : i32
    %c0_i32_0 = arith.constant 0 : i32
    %c0_i32_1 = arith.constant 0 : i32
    return %c0_i32, %c0_i32_0 : i32, i32
  }
  func.func @transform_4(%arg0: i32) -> (i32, i32) {
    %c0_i32 = arith.constant 0 : i32
    %c0_i32_0 = arith.constant 0 : i32
    %c0_i32_1 = arith.constant 0 : i32
    return %c0_i32, %c0_i32_0 : i32, i32
  }
  func.func @transform_5(%arg0: i32) -> (i32, i32) {
    %c0_i32 = arith.constant 0 : i32
    %c0_i32_0 = arith.constant 0 : i32
    %c0_i32_1 = arith.constant 0 : i32
    return %c0_i32, %c0_i32_0 : i32, i32
  }
  func.func @transform_6(%arg0: i32) -> (i32, i32) {
    %c0_i32 = arith.constant 0 : i32
    %c0_i32_0 = arith.constant 0 : i32
    %c0_i32_1 = arith.constant 0 : i32
    return %c0_i32, %c0_i32_0 : i32, i32
  }
  func.func @transform_7(%arg0: i32) -> (i32, i32) {
    %c0_i32 = arith.constant 0 : i32
    %c0_i32_0 = arith.constant 0 : i32
    return %arg0, %c0_i32 : i32, i32
  }
}

</mosaic_0001>

<llo_original>
// kernel: tpu_custom_call.1
$region0: #{tpu_custom_call.1}
  #allocation0 [shape = 'u32[]', space=smem, size = 0x4, offset = 0x4, fixed_abs, tag = 'smem constant byte address 0x4 - core index']
  #allocation1 [shape = 'u32[72,128]{1,0:T(1,128)}', space=vmem, size = 0x9000, scoped, tag = 'internal scratch']
  #allocation2 [shape = 'f32[1,1]{1,0:T(1,128)S(1)}', space=vmem, size = 0x200, scoped, tag = 'scoped memory for tpu_custom_call.1']
  %s0 = inlined_call_operand.hbm [shape: f32[2,784], index: 0, kind: input, shape index: {}]
  %s1 = inlined_call_operand.hbm [shape: bf16[784,512], index: 1, kind: input, shape index: {}]
  %s2 = inlined_call_operand.hbm [shape: f32[1,512], index: 2, kind: input, shape index: {}]
  %s3 = inlined_call_operand.hbm [shape: bf16[512,256], index: 3, kind: input, shape index: {}]
  %s4 = inlined_call_operand.vmem [shape: f32[1,256], index: 4, kind: input, shape index: {}]
  %s5 = inlined_call_operand.hbm [shape: bf16[256,128], index: 5, kind: input, shape index: {}]
  %s6 = inlined_call_operand.<no memory space> [shape: f32[1,1], index: 6, kind: input, shape index: {}]
  %s7 = inlined_call_operand.vmem [shape: f32[2,1], index: 7, kind: output, shape index: {}]
  %s8 = sld [smem:[#allocation0]]
  $region58: #{tpu_custom_call.1} parent=0
    _
  %s10 = ssub.s32 1, %s8
  %s11 = scalar_select 0, %s10, %s8
  %v12 = vstv %s6
  %13 = vst [vmem:[#allocation2] sm:$0x1] %v12
  $region1: #{tpu_custom_call.1} parent=0
    #allocation3 [shape = 'u8[7168]{0}', space=vmem, size = 0x1c00, scoped, tag = 'input window, operand 0, single buffered']
    #allocation4 [shape = 's32[1]{0}', space=sflag, size = 0x4, scoped, tag = 'scoped memory for tpu_custom_call.1']
    #allocation5 [shape = 'u8[802816]{0}', space=vmem, size = 0xc4000, scoped, tag = 'input window, operand 1, single buffered']
    #allocation6 [shape = 's32[1]{0}', space=sflag, size = 0x4, scoped, tag = 'scoped memory for tpu_custom_call.1']
    #allocation7 [shape = 'u8[2048]{0}', space=vmem, size = 0x800, scoped, tag = 'input window, operand 2, single buffered']
    #allocation8 [shape = 'u8[262144]{0}', space=vmem, size = 0x40000, scoped, tag = 'input window, operand 3, single buffered']
    #allocation9 [shape = 's32[1]{0}', space=sflag, size = 0x4, scoped, tag = 'scoped memory for tpu_custom_call.1']
    #allocation10 [shape = 'u8[65536]{0}', space=vmem, size = 0x10000, scoped, tag = 'input window, operand 5, single buffered']
    %14 = vsyncpa [#allocation4], 0
    %15 = vsyncpa [#allocation6], 0
    %16 = vsyncpa [#allocation9], 0
    // Predicated region
    $region2: #{tpu_custom_call.1} parent=1 // pred_check
      _
    $region3: #{tpu_custom_call.1} parent=1 // pred_check_branch
      %18 = sbr.rel (0) target = $region5
    $region4: #{tpu_custom_call.1} parent=1 // pred_region
      %20 = vsyncadd [#allocation4], 0
      %s22 = sshll.u32 %s0, 4
      %s23 = int_to_ptr.hbm [resolvable:$true] %s22
      %s24 = sshll.u32 [#allocation3], 4
      %s25 = int_to_ptr.vmem [resolvable:$true] %s24
      %27 = dma.hbm_to_vmem [thread:$0]  %s23, 224, %s25, [#allocation4]
    $region5: #{tpu_custom_call.1} parent=1 // pred_fallthru
      _
    // Predicated region
    $region6: #{tpu_custom_call.1} parent=1 // pred_check
      _
    $region7: #{tpu_custom_call.1} parent=1 // pred_check_branch
      %29 = sbr.rel (0) target = $region9
    $region8: #{tpu_custom_call.1} parent=1 // pred_region
      %31 = vsyncadd [#allocation6], 0
      %s32 = sshll.u32 %s1, 4
      %s33 = int_to_ptr.hbm [resolvable:$true] %s32
      %s34 = sshll.u32 [#allocation5], 4
      %s35 = int_to_ptr.vmem [resolvable:$true] %s34
      %40 = dma.hbm_to_vmem [thread:$0]  %s33, 25088, %s35, [#allocation6], 256, 256, 16
    $region9: #{tpu_custom_call.1} parent=1 // pred_fallthru
      _
    // Predicated region
    $region10: #{tpu_custom_call.1} parent=1 // pred_check
      _
    $region11: #{tpu_custom_call.1} parent=1 // pred_check_branch
      %42 = sbr.rel (0) target = $region13
    $region12: #{tpu_custom_call.1} parent=1 // pred_region
      %44 = vsyncadd [#allocation6], 0
      %s46 = sshll.u32 %s2, 4
      %s47 = int_to_ptr.hbm [resolvable:$true] %s46
      %s48 = sshll.u32 [#allocation7], 4
      %s49 = int_to_ptr.vmem [resolvable:$true] %s48
      %51 = dma.hbm_to_vmem [thread:$0]  %s47, 64, %s49, [#allocation6]
    $region13: #{tpu_custom_call.1} parent=1 // pred_fallthru
      _
    // Predicated region
    $region14: #{tpu_custom_call.1} parent=1 // pred_check
      _
    $region15: #{tpu_custom_call.1} parent=1 // pred_check_branch
      %53 = sbr.rel (0) target = $region17
    $region16: #{tpu_custom_call.1} parent=1 // pred_region
      %55 = vsyncadd [#allocation9], 0
      %s56 = sshll.u32 %s3, 4
      %s57 = int_to_ptr.hbm [resolvable:$true] %s56
      %s58 = sshll.u32 [#allocation8], 4
      %s59 = int_to_ptr.vmem [resolvable:$true] %s58
      %64 = dma.hbm_to_vmem [thread:$0]  %s57, 8192, %s59, [#allocation9], 128, 128, 8
    $region17: #{tpu_custom_call.1} parent=1 // pred_fallthru
      _
    // Predicated region
    $region18: #{tpu_custom_call.1} parent=1 // pred_check
      _
    $region19: #{tpu_custom_call.1} parent=1 // pred_check_branch
      %66 = sbr.rel (0) target = $region21
    $region20: #{tpu_custom_call.1} parent=1 // pred_region
      _
    $region21: #{tpu_custom_call.1} parent=1 // pred_fallthru
      _
    // Predicated region
    $region22: #{tpu_custom_call.1} parent=1 // pred_check
      _
    $region23: #{tpu_custom_call.1} parent=1 // pred_check_branch
      %68 = sbr.rel (0) target = $region25
    $region24: #{tpu_custom_call.1} parent=1 // pred_region
      %70 = vsyncadd [#allocation9], 0
      %s71 = sshll.u32 %s5, 4
      %s72 = int_to_ptr.hbm [resolvable:$true] %s71
      %s73 = sshll.u32 [#allocation10], 4
      %s74 = int_to_ptr.vmem [resolvable:$true] %s73
      %79 = dma.hbm_to_vmem [thread:$0]  %s72, 2048, %s74, [#allocation9], 64, 64, 4
    $region25: #{tpu_custom_call.1} parent=1 // pred_fallthru
      _
    // Predicated region
    $region26: #{tpu_custom_call.1} parent=1 // pred_check
      _
    $region27: #{tpu_custom_call.1} parent=1 // pred_check_branch
      %81 = sbr.rel (0) target = $region29
    $region28: #{tpu_custom_call.1} parent=1 // pred_region
      _
    $region29: #{tpu_custom_call.1} parent=1 // pred_fallthru
      _
    // Predicated region
    $region30: #{tpu_custom_call.1} parent=1 // pred_check
      _
    $region31: #{tpu_custom_call.1} parent=1 // pred_check_branch
      %83 = sbr.rel (0) target = $region33
    $region32: #{tpu_custom_call.1} parent=1 // pred_region
      %85 = dma.done [#allocation4], 224
    $region33: #{tpu_custom_call.1} parent=1 // pred_fallthru
      _
    // Predicated region
    $region34: #{tpu_custom_call.1} parent=1 // pred_check
      _
    $region35: #{tpu_custom_call.1} parent=1 // pred_check_branch
      %87 = sbr.rel (0) target = $region37
    $region36: #{tpu_custom_call.1} parent=1 // pred_region
      %89 = dma.done [#allocation6], 25088
    $region37: #{tpu_custom_call.1} parent=1 // pred_fallthru
      _
    // Predicated region
    $region38: #{tpu_custom_call.1} parent=1 // pred_check
      _
    $region39: #{tpu_custom_call.1} parent=1 // pred_check_branch
      %91 = sbr.rel (0) target = $region41
    $region40: #{tpu_custom_call.1} parent=1 // pred_region
      %93 = dma.done [#allocation6], 64
    $region41: #{tpu_custom_call.1} parent=1 // pred_fallthru
      _
    // Predicated region
    $region42: #{tpu_custom_call.1} parent=1 // pred_check
      _
    $region43: #{tpu_custom_call.1} parent=1 // pred_check_branch
      %95 = sbr.rel (0) target = $region45
    $region44: #{tpu_custom_call.1} parent=1 // pred_region
      %97 = dma.done [#allocation9], 8192
    $region45: #{tpu_custom_call.1} parent=1 // pred_fallthru
      _
    // Predicated region
    $region46: #{tpu_custom_call.1} parent=1 // pred_check
      _
    $region47: #{tpu_custom_call.1} parent=1 // pred_check_branch
      %99 = sbr.rel (0) target = $region49
    $region48: #{tpu_custom_call.1} parent=1 // pred_region
      %101 = dma.done [#allocation9], 2048
    $region49: #{tpu_custom_call.1} parent=1 // pred_fallthru
      _
    %v103 = vld [vmem:[#allocation3] sm:$0xff]
    %v104 = vld [vmem:[#allocation3 + $0x8] sm:$0x3f]
    %107 = vst [vmem:[#allocation1] ss:$4 sm:$0xff] %v103
    %s108 = scalar_lea.vmem [#allocation1], 32
    %109 = vst [vmem:[%s108] ss:$4 sm:$0xff] %v104
    %v110 = vld.sshfl [vmem:[#allocation1] sm:$0xff pattern:$0x73625140]
    %v111 = vld.sshfl [vmem:[#allocation1 + $0x8] sm:$0xff pattern:$0x73625140]
    %v112 = vld.sshfl [vmem:[#allocation1 + $0x10] sm:$0xff pattern:$0x73625140]
    %v113 = vld.sshfl [vmem:[#allocation1 + $0x18] sm:$0xff pattern:$0x73625140]
    %v114 = vld.sshfl [vmem:[#allocation1 + $0x20] sm:$0xff pattern:$0x73625140]
    %v115 = vld.sshfl [vmem:[#allocation1 + $0x28] sm:$0xff pattern:$0x73625140]
    %v116 = vld.sshfl [vmem:[#allocation1 + $0x30] sm:$0xff pattern:$0x73625140]
    %v124 = vpack.c.bf16 %v110, %v110
    %v125 = vpack.c.bf16 %v111, %v111
    %v126 = vpack.c.bf16 %v112, %v112
    %v127 = vpack.c.bf16 %v113, %v113
    %v128 = vpack.c.bf16 %v114, %v114
    %v129 = vpack.c.bf16 %v115, %v115
    %v130 = vpack.c.bf16 %v116, %v116
    %v131 = vld [vmem:[#allocation5] sm:$0xff]
    %v132 = vld [vmem:[#allocation5 + $0x8] sm:$0xff]
    %v133 = vld [vmem:[#allocation5 + $0x10] sm:$0xff]
    %v134 = vld [vmem:[#allocation5 + $0x18] sm:$0xff]
    %v135 = vld [vmem:[#allocation5 + $0x20] sm:$0xff]
    %v136 = vld [vmem:[#allocation5 + $0x28] sm:$0xff]
    %v137 = vld [vmem:[#allocation5 + $0x30] sm:$0xff]
    %v138 = vld [vmem:[#allocation5 + $0x38] sm:$0xff]
    %v139 = vld [vmem:[#allocation5 + $0x40] sm:$0xff]
    %v140 = vld [vmem:[#allocation5 + $0x48] sm:$0xff]
    %v141 = vld [vmem:[#allocation5 + $0x50] sm:$0xff]
    %v142 = vld [vmem:[#allocation5 + $0x58] sm:$0xff]
    %v143 = vld [vmem:[#allocation5 + $0x60] sm:$0xff]
    %v144 = vld [vmem:[#allocation5 + $0x68] sm:$0xff]
    %v145 = vld [vmem:[#allocation5 + $0x70] sm:$0xff]
    %v146 = vld [vmem:[#allocation5 + $0x78] sm:$0xff]
    %v147 = vld [vmem:[#allocation5 + $0x80] sm:$0xff]
    %v148 = vld [vmem:[#allocation5 + $0x88] sm:$0xff]
    %v149 = vld [vmem:[#allocation5 + $0x90] sm:$0xff]
    %v150 = vld [vmem:[#allocation5 + $0x98] sm:$0xff]
    %v151 = vld [vmem:[#allocation5 + $0xa0] sm:$0xff]
    %v152 = vld [vmem:[#allocation5 + $0xa8] sm:$0xff]
    %v153 = vld [vmem:[#allocation5 + $0xb0] sm:$0xff]
    %v154 = vld [vmem:[#allocation5 + $0xb8] sm:$0xff]
    %v155 = vld [vmem:[#allocation5 + $0xc0] sm:$0xff]
    %v156 = vld [vmem:[#allocation5 + $0xc8] sm:$0xff]
    %v157 = vld [vmem:[#allocation5 + $0xd0] sm:$0xff]
    %v158 = vld [vmem:[#allocation5 + $0xd8] sm:$0xff]
    %v159 = vld [vmem:[#allocation5 + $0xe0] sm:$0xff]
    %v160 = vld [vmem:[#allocation5 + $0xe8] sm:$0xff]
    %v161 = vld [vmem:[#allocation5 + $0xf0] sm:$0xff]
    %v162 = vld [vmem:[#allocation5 + $0xf8] sm:$0xff]
    %v163 = vld [vmem:[#allocation5 + $0x100] sm:$0xff]
    %v164 = vld [vmem:[#allocation5 + $0x108] sm:$0xff]
    %v165 = vld [vmem:[#allocation5 + $0x110] sm:$0xff]
    %v166 = vld [vmem:[#allocation5 + $0x118] sm:$0xff]
    %v167 = vld [vmem:[#allocation5 + $0x120] sm:$0xff]
    %v168 = vld [vmem:[#allocation5 + $0x128] sm:$0xff]
    %v169 = vld [vmem:[#allocation5 + $0x130] sm:$0xff]
    %v170 = vld [vmem:[#allocation5 + $0x138] sm:$0xff]
    %v171 = vld [vmem:[#allocation5 + $0x140] sm:$0xff]
    %v172 = vld [vmem:[#allocation5 + $0x148] sm:$0xff]
    %v173 = vld [vmem:[#allocation5 + $0x150] sm:$0xff]
    %v174 = vld [vmem:[#allocation5 + $0x158] sm:$0xff]
    %v175 = vld [vmem:[#allocation5 + $0x160] sm:$0xff]
    %v176 = vld [vmem:[#allocation5 + $0x168] sm:$0xff]
    %v177 = vld [vmem:[#allocation5 + $0x170] sm:$0xff]
    %v178 = vld [vmem:[#allocation5 + $0x178] sm:$0xff]
    %v179 = vld [vmem:[#allocation5 + $0x180] sm:$0xff]
    %v180 = vld [vmem:[#allocation5 + $0x188] sm:$0xff]
    %v181 = vld [vmem:[#allocation5 + $0x190] sm:$0xff]
    %v182 = vld [vmem:[#allocation5 + $0x198] sm:$0xff]
    %v183 = vld [vmem:[#allocation5 + $0x1a0] sm:$0xff]
    %v184 = vld [vmem:[#allocation5 + $0x1a8] sm:$0xff]
    %v185 = vld [vmem:[#allocation5 + $0x1b0] sm:$0xff]
    %v186 = vld [vmem:[#allocation5 + $0x1b8] sm:$0xff]
    %v187 = vld [vmem:[#allocation5 + $0x1c0] sm:$0xff]
    %v188 = vld [vmem:[#allocation5 + $0x1c8] sm:$0xff]
    %v189 = vld [vmem:[#allocation5 + $0x1d0] sm:$0xff]
    %v190 = vld [vmem:[#allocation5 + $0x1d8] sm:$0xff]
    %v191 = vld [vmem:[#allocation5 + $0x1e0] sm:$0xff]
    %v192 = vld [vmem:[#allocation5 + $0x1e8] sm:$0xff]
    %v193 = vld [vmem:[#allocation5 + $0x1f0] sm:$0xff]
    %v194 = vld [vmem:[#allocation5 + $0x1f8] sm:$0xff]
    %v195 = vld [vmem:[#allocation5 + $0x200] sm:$0xff]
    %v196 = vld [vmem:[#allocation5 + $0x208] sm:$0xff]
    %v197 = vld [vmem:[#allocation5 + $0x210] sm:$0xff]
    %v198 = vld [vmem:[#allocation5 + $0x218] sm:$0xff]
    %v199 = vld [vmem:[#allocation5 + $0x220] sm:$0xff]
    %v200 = vld [vmem:[#allocation5 + $0x228] sm:$0xff]
    %v201 = vld [vmem:[#allocation5 + $0x230] sm:$0xff]
    %v202 = vld [vmem:[#allocation5 + $0x238] sm:$0xff]
    %v203 = vld [vmem:[#allocation5 + $0x240] sm:$0xff]
    %v204 = vld [vmem:[#allocation5 + $0x248] sm:$0xff]
    %v205 = vld [vmem:[#allocation5 + $0x250] sm:$0xff]
    %v206 = vld [vmem:[#allocation5 + $0x258] sm:$0xff]
    %v207 = vld [vmem:[#allocation5 + $0x260] sm:$0xff]
    %v208 = vld [vmem:[#allocation5 + $0x268] sm:$0xff]
    %v209 = vld [vmem:[#allocation5 + $0x270] sm:$0xff]
    %v210 = vld [vmem:[#allocation5 + $0x278] sm:$0xff]
    %v211 = vld [vmem:[#allocation5 + $0x280] sm:$0xff]
    %v212 = vld [vmem:[#allocation5 + $0x288] sm:$0xff]
    %v213 = vld [vmem:[#allocation5 + $0x290] sm:$0xff]
    %v214 = vld [vmem:[#allocation5 + $0x298] sm:$0xff]
    %v215 = vld [vmem:[#allocation5 + $0x2a0] sm:$0xff]
    %v216 = vld [vmem:[#allocation5 + $0x2a8] sm:$0xff]
    %v217 = vld [vmem:[#allocation5 + $0x2b0] sm:$0xff]
    %v218 = vld [vmem:[#allocation5 + $0x2b8] sm:$0xff]
    %v219 = vld [vmem:[#allocation5 + $0x2c0] sm:$0xff]
    %v220 = vld [vmem:[#allocation5 + $0x2c8] sm:$0xff]
    %v221 = vld [vmem:[#allocation5 + $0x2d0] sm:$0xff]
    %v222 = vld [vmem:[#allocation5 + $0x2d8] sm:$0xff]
    %v223 = vld [vmem:[#allocation5 + $0x2e0] sm:$0xff]
    %v224 = vld [vmem:[#allocation5 + $0x2e8] sm:$0xff]
    %v225 = vld [vmem:[#allocation5 + $0x2f0] sm:$0xff]
    %v226 = vld [vmem:[#allocation5 + $0x2f8] sm:$0xff]
    %v227 = vld [vmem:[#allocation5 + $0x300] sm:$0xff]
    %v228 = vld [vmem:[#allocation5 + $0x308] sm:$0xff]
    %v229 = vld [vmem:[#allocation5 + $0x310] sm:$0xff]
    %v230 = vld [vmem:[#allocation5 + $0x318] sm:$0xff]
    %v231 = vld [vmem:[#allocation5 + $0x320] sm:$0xff]
    %v232 = vld [vmem:[#allocation5 + $0x328] sm:$0xff]
    %v233 = vld [vmem:[#allocation5 + $0x330] sm:$0xff]
    %v234 = vld [vmem:[#allocation5 + $0x338] sm:$0xff]
    %v235 = vld [vmem:[#allocation5 + $0x340] sm:$0xff]
    %v236 = vld [vmem:[#allocation5 + $0x348] sm:$0xff]
    %v237 = vld [vmem:[#allocation5 + $0x350] sm:$0xff]
    %v238 = vld [vmem:[#allocation5 + $0x358] sm:$0xff]
    %v239 = vld [vmem:[#allocation5 + $0x360] sm:$0xff]
    %v240 = vld [vmem:[#allocation5 + $0x368] sm:$0xff]
    %v241 = vld [vmem:[#allocation5 + $0x370] sm:$0xff]
    %v242 = vld [vmem:[#allocation5 + $0x378] sm:$0xff]
    %v243 = vld [vmem:[#allocation5 + $0x380] sm:$0xff]
    %v244 = vld [vmem:[#allocation5 + $0x388] sm:$0xff]
    %v245 = vld [vmem:[#allocation5 + $0x390] sm:$0xff]
    %v246 = vld [vmem:[#allocation5 + $0x398] sm:$0xff]
    %v247 = vld [vmem:[#allocation5 + $0x3a0] sm:$0xff]
    %v248 = vld [vmem:[#allocation5 + $0x3a8] sm:$0xff]
    %v249 = vld [vmem:[#allocation5 + $0x3b0] sm:$0xff]
    %v250 = vld [vmem:[#allocation5 + $0x3b8] sm:$0xff]
    %v251 = vld [vmem:[#allocation5 + $0x3c0] sm:$0xff]
    %v252 = vld [vmem:[#allocation5 + $0x3c8] sm:$0xff]
    %v253 = vld [vmem:[#allocation5 + $0x3d0] sm:$0xff]
    %v254 = vld [vmem:[#allocation5 + $0x3d8] sm:$0xff]
    %v255 = vld [vmem:[#allocation5 + $0x3e0] sm:$0xff]
    %v256 = vld [vmem:[#allocation5 + $0x3e8] sm:$0xff]
    %v257 = vld [vmem:[#allocation5 + $0x3f0] sm:$0xff]
    %v258 = vld [vmem:[#allocation5 + $0x3f8] sm:$0xff]
    %v259 = vld [vmem:[#allocation5 + $0x400] sm:$0xff]
    %v260 = vld [vmem:[#allocation5 + $0x408] sm:$0xff]
    %v261 = vld [vmem:[#allocation5 + $0x410] sm:$0xff]
    %v262 = vld [vmem:[#allocation5 + $0x418] sm:$0xff]
    %v263 = vld [vmem:[#allocation5 + $0x420] sm:$0xff]
    %v264 = vld [vmem:[#allocation5 + $0x428] sm:$0xff]
    %v265 = vld [vmem:[#allocation5 + $0x430] sm:$0xff]
    %v266 = vld [vmem:[#allocation5 + $0x438] sm:$0xff]
    %v267 = vld [vmem:[#allocation5 + $0x440] sm:$0xff]
    %v268 = vld [vmem:[#allocation5 + $0x448] sm:$0xff]
    %v269 = vld [vmem:[#allocation5 + $0x450] sm:$0xff]
    %v270 = vld [vmem:[#allocation5 + $0x458] sm:$0xff]
    %v271 = vld [vmem:[#allocation5 + $0x460] sm:$0xff]
    %v272 = vld [vmem:[#allocation5 + $0x468] sm:$0xff]
    %v273 = vld [vmem:[#allocation5 + $0x470] sm:$0xff]
    %v274 = vld [vmem:[#allocation5 + $0x478] sm:$0xff]
    %v275 = vld [vmem:[#allocation5 + $0x480] sm:$0xff]
    %v276 = vld [vmem:[#allocation5 + $0x488] sm:$0xff]
    %v277 = vld [vmem:[#allocation5 + $0x490] sm:$0xff]
    %v278 = vld [vmem:[#allocation5 + $0x498] sm:$0xff]
    %v279 = vld [vmem:[#allocation5 + $0x4a0] sm:$0xff]
    %v280 = vld [vmem:[#allocation5 + $0x4a8] sm:$0xff]
    %v281 = vld [vmem:[#allocation5 + $0x4b0] sm:$0xff]
    %v282 = vld [vmem:[#allocation5 + $0x4b8] sm:$0xff]
    %v283 = vld [vmem:[#allocation5 + $0x4c0] sm:$0xff]
    %v284 = vld [vmem:[#allocation5 + $0x4c8] sm:$0xff]
    %v285 = vld [vmem:[#allocation5 + $0x4d0] sm:$0xff]
    %v286 = vld [vmem:[#allocation5 + $0x4d8] sm:$0xff]
    %v287 = vld [vmem:[#allocation5 + $0x4e0] sm:$0xff]
    %v288 = vld [vmem:[#allocation5 + $0x4e8] sm:$0xff]
    %v289 = vld [vmem:[#allocation5 + $0x4f0] sm:$0xff]
    %v290 = vld [vmem:[#allocation5 + $0x4f8] sm:$0xff]
    %v291 = vld [vmem:[#allocation5 + $0x500] sm:$0xff]
    %v292 = vld [vmem:[#allocation5 + $0x508] sm:$0xff]
    %v293 = vld [vmem:[#allocation5 + $0x510] sm:$0xff]
    %v294 = vld [vmem:[#allocation5 + $0x518] sm:$0xff]
    %v295 = vld [vmem:[#allocation5 + $0x520] sm:$0xff]
    %v296 = vld [vmem:[#allocation5 + $0x528] sm:$0xff]
    %v297 = vld [vmem:[#allocation5 + $0x530] sm:$0xff]
    %v298 = vld [vmem:[#allocation5 + $0x538] sm:$0xff]
    %v299 = vld [vmem:[#allocation5 + $0x540] sm:$0xff]
    %v300 = vld [vmem:[#allocation5 + $0x548] sm:$0xff]
    %v301 = vld [vmem:[#allocation5 + $0x550] sm:$0xff]
    %v302 = vld [vmem:[#allocation5 + $0x558] sm:$0xff]
    %v303 = vld [vmem:[#allocation5 + $0x560] sm:$0xff]
    %v304 = vld [vmem:[#allocation5 + $0x568] sm:$0xff]
    %v305 = vld [vmem:[#allocation5 + $0x570] sm:$0xff]
    %v306 = vld [vmem:[#allocation5 + $0x578] sm:$0xff]
    %v307 = vld [vmem:[#allocation5 + $0x580] sm:$0xff]
    %v308 = vld [vmem:[#allocation5 + $0x588] sm:$0xff]
    %v309 = vld [vmem:[#allocation5 + $0x590] sm:$0xff]
    %v310 = vld [vmem:[#allocation5 + $0x598] sm:$0xff]
    %v311 = vld [vmem:[#allocation5 + $0x5a0] sm:$0xff]
    %v312 = vld [vmem:[#allocation5 + $0x5a8] sm:$0xff]
    %v313 = vld [vmem:[#allocation5 + $0x5b0] sm:$0xff]
    %v314 = vld [vmem:[#allocation5 + $0x5b8] sm:$0xff]
    %v315 = vld [vmem:[#allocation5 + $0x5c0] sm:$0xff]
    %v316 = vld [vmem:[#allocation5 + $0x5c8] sm:$0xff]
    %v317 = vld [vmem:[#allocation5 + $0x5d0] sm:$0xff]
    %v318 = vld [vmem:[#allocation5 + $0x5d8] sm:$0xff]
    %v319 = vld [vmem:[#allocation5 + $0x5e0] sm:$0xff]
    %v320 = vld [vmem:[#allocation5 + $0x5e8] sm:$0xff]
    %v321 = vld [vmem:[#allocation5 + $0x5f0] sm:$0xff]
    %v322 = vld [vmem:[#allocation5 + $0x5f8] sm:$0xff]
    %v323 = vld [vmem:[#allocation5 + $0x600] sm:$0xff]
    %v324 = vld [vmem:[#allocation5 + $0x608] sm:$0xff]
    %v325 = vld [vmem:[#allocation5 + $0x610] sm:$0xff]
    %v326 = vld [vmem:[#allocation5 + $0x618] sm:$0xff]
    %v327 = vld [vmem:[#allocation7] sm:$0xf]
    %v329 = vperm.slane %v327, 0
    %v330 = vperm.slane %v327, 1
    %v331 = vperm.slane %v327, 2
    %v332 = vperm.slane %v327, 3
    %v533 = vunpack.c.l.b16 %v131
    %v534 = vunpack.c.h.b16 %v131
    %v535 = vunpack.c.l.b16 %v132
    %v536 = vunpack.c.h.b16 %v132
    %v537 = vunpack.c.l.b16 %v133
    %v538 = vunpack.c.h.b16 %v133
    %v539 = vunpack.c.l.b16 %v134
    %v540 = vunpack.c.h.b16 %v134
    %v541 = vunpack.c.l.b16 %v135
    %v542 = vunpack.c.h.b16 %v135
    %v543 = vunpack.c.l.b16 %v136
    %v544 = vunpack.c.h.b16 %v136
    %v545 = vunpack.c.l.b16 %v137
    %v546 = vunpack.c.h.b16 %v137
    %v547 = vunpack.c.l.b16 %v138
    %v548 = vunpack.c.h.b16 %v138
    %v549 = vunpack.c.l.b16 %v139
    %v550 = vunpack.c.h.b16 %v139
    %v551 = vunpack.c.l.b16 %v140
    %v552 = vunpack.c.h.b16 %v140
    %v553 = vunpack.c.l.b16 %v141
    %v554 = vunpack.c.h.b16 %v141
    %v555 = vunpack.c.l.b16 %v142
    %v556 = vunpack.c.h.b16 %v142
    %v557 = vunpack.c.l.b16 %v143
    %v558 = vunpack.c.h.b16 %v143
    %v559 = vunpack.c.l.b16 %v144
    %v560 = vunpack.c.h.b16 %v144
    %v561 = vunpack.c.l.b16 %v145
    %v562 = vunpack.c.h.b16 %v145
    %v563 = vunpack.c.l.b16 %v146
    %v564 = vunpack.c.h.b16 %v146
    %v565 = vunpack.c.l.b16 %v147
    %v566 = vunpack.c.h.b16 %v147
    %v567 = vunpack.c.l.b16 %v148
    %v568 = vunpack.c.h.b16 %v148
    %v569 = vunpack.c.l.b16 %v149
    %v570 = vunpack.c.h.b16 %v149
    %v571 = vunpack.c.l.b16 %v150
    %v572 = vunpack.c.h.b16 %v150
    %v573 = vunpack.c.l.b16 %v151
    %v574 = vunpack.c.h.b16 %v151
    %v575 = vunpack.c.l.b16 %v152
    %v576 = vunpack.c.h.b16 %v152
    %v577 = vunpack.c.l.b16 %v153
    %v578 = vunpack.c.h.b16 %v153
    %v579 = vunpack.c.l.b16 %v154
    %v580 = vunpack.c.h.b16 %v154
    %v581 = vunpack.c.l.b16 %v155
    %v582 = vunpack.c.h.b16 %v155
    %v583 = vunpack.c.l.b16 %v156
    %v584 = vunpack.c.h.b16 %v156
    %v585 = vunpack.c.l.b16 %v157
    %v586 = vunpack.c.h.b16 %v157
    %v587 = vunpack.c.l.b16 %v158
    %v588 = vunpack.c.h.b16 %v158
    %v589 = vunpack.c.l.b16 %v159
    %v590 = vunpack.c.h.b16 %v159
    %v591 = vunpack.c.l.b16 %v160
    %v592 = vunpack.c.h.b16 %v160
    %v593 = vunpack.c.l.b16 %v161
    %v594 = vunpack.c.h.b16 %v161
    %v595 = vunpack.c.l.b16 %v162
    %v596 = vunpack.c.h.b16 %v162
    %v597 = vunpack.c.l.b16 %v163
    %v598 = vunpack.c.h.b16 %v163
    %v599 = vunpack.c.l.b16 %v164
    %v600 = vunpack.c.h.b16 %v164
    %v601 = vunpack.c.l.b16 %v165
    %v602 = vunpack.c.h.b16 %v165
    %v603 = vunpack.c.l.b16 %v166
    %v604 = vunpack.c.h.b16 %v166
    %v605 = vunpack.c.l.b16 %v167
    %v606 = vunpack.c.h.b16 %v167
    %v607 = vunpack.c.l.b16 %v168
    %v608 = vunpack.c.h.b16 %v168
    %v609 = vunpack.c.l.b16 %v169
    %v610 = vunpack.c.h.b16 %v169
    %v611 = vunpack.c.l.b16 %v170
    %v612 = vunpack.c.h.b16 %v170
    %v613 = vunpack.c.l.b16 %v171
    %v614 = vunpack.c.h.b16 %v171
    %v615 = vunpack.c.l.b16 %v172
    %v616 = vunpack.c.h.b16 %v172
    %v617 = vunpack.c.l.b16 %v173
    %v618 = vunpack.c.h.b16 %v173
    %v619 = vunpack.c.l.b16 %v174
    %v620 = vunpack.c.h.b16 %v174
    %v621 = vunpack.c.l.b16 %v175
    %v622 = vunpack.c.h.b16 %v175
    %v623 = vunpack.c.l.b16 %v176
    %v624 = vunpack.c.h.b16 %v176
    %v625 = vunpack.c.l.b16 %v177
    %v626 = vunpack.c.h.b16 %v177
    %v627 = vunpack.c.l.b16 %v178
    %v628 = vunpack.c.h.b16 %v178
    %v629 = vunpack.c.l.b16 %v179
    %v630 = vunpack.c.h.b16 %v179
    %v631 = vunpack.c.l.b16 %v180
    %v632 = vunpack.c.h.b16 %v180
    %v633 = vunpack.c.l.b16 %v181
    %v634 = vunpack.c.h.b16 %v181
    %v635 = vunpack.c.l.b16 %v182
    %v636 = vunpack.c.h.b16 %v182
    %v637 = vunpack.c.l.b16 %v183
    %v638 = vunpack.c.h.b16 %v183
    %v639 = vunpack.c.l.b16 %v184
    %v640 = vunpack.c.h.b16 %v184
    %v641 = vunpack.c.l.b16 %v185
    %v642 = vunpack.c.h.b16 %v185
    %v643 = vunpack.c.l.b16 %v186
    %v644 = vunpack.c.h.b16 %v186
    %v645 = vunpack.c.l.b16 %v187
    %v646 = vunpack.c.h.b16 %v187
    %v647 = vunpack.c.l.b16 %v188
    %v648 = vunpack.c.h.b16 %v188
    %v649 = vunpack.c.l.b16 %v189
    %v650 = vunpack.c.h.b16 %v189
    %v651 = vunpack.c.l.b16 %v190
    %v652 = vunpack.c.h.b16 %v190
    %v653 = vunpack.c.l.b16 %v191
    %v654 = vunpack.c.h.b16 %v191
    %v655 = vunpack.c.l.b16 %v192
    %v656 = vunpack.c.h.b16 %v192
    %v657 = vunpack.c.l.b16 %v193
    %v658 = vunpack.c.h.b16 %v193
    %v659 = vunpack.c.l.b16 %v194
    %v660 = vunpack.c.h.b16 %v194
    %v661 = vunpack.c.l.b16 %v195
    %v662 = vunpack.c.h.b16 %v195
    %v663 = vunpack.c.l.b16 %v196
    %v664 = vunpack.c.h.b16 %v196
    %v665 = vunpack.c.l.b16 %v197
    %v666 = vunpack.c.h.b16 %v197
    %v667 = vunpack.c.l.b16 %v198
    %v668 = vunpack.c.h.b16 %v198
    %v669 = vunpack.c.l.b16 %v199
    %v670 = vunpack.c.h.b16 %v199
    %v671 = vunpack.c.l.b16 %v200
    %v672 = vunpack.c.h.b16 %v200
    %v673 = vunpack.c.l.b16 %v201
    %v674 = vunpack.c.h.b16 %v201
    %v675 = vunpack.c.l.b16 %v202
    %v676 = vunpack.c.h.b16 %v202
    %v677 = vunpack.c.l.b16 %v203
    %v678 = vunpack.c.h.b16 %v203
    %v679 = vunpack.c.l.b16 %v204
    %v680 = vunpack.c.h.b16 %v204
    %v681 = vunpack.c.l.b16 %v205
    %v682 = vunpack.c.h.b16 %v205
    %v683 = vunpack.c.l.b16 %v206
    %v684 = vunpack.c.h.b16 %v206
    %v685 = vunpack.c.l.b16 %v207
    %v686 = vunpack.c.h.b16 %v207
    %v687 = vunpack.c.l.b16 %v208
    %v688 = vunpack.c.h.b16 %v208
    %v689 = vunpack.c.l.b16 %v209
    %v690 = vunpack.c.h.b16 %v209
    %v691 = vunpack.c.l.b16 %v210
    %v692 = vunpack.c.h.b16 %v210
    %v693 = vunpack.c.l.b16 %v211
    %v694 = vunpack.c.h.b16 %v211
    %v695 = vunpack.c.l.b16 %v212
    %v696 = vunpack.c.h.b16 %v212
    %v697 = vunpack.c.l.b16 %v213
    %v698 = vunpack.c.h.b16 %v213
    %v699 = vunpack.c.l.b16 %v214
    %v700 = vunpack.c.h.b16 %v214
    %v701 = vunpack.c.l.b16 %v215
    %v702 = vunpack.c.h.b16 %v215
    %v703 = vunpack.c.l.b16 %v216
    %v704 = vunpack.c.h.b16 %v216
    %v705 = vunpack.c.l.b16 %v217
    %v706 = vunpack.c.h.b16 %v217
    %v707 = vunpack.c.l.b16 %v218
    %v708 = vunpack.c.h.b16 %v218
    %v709 = vunpack.c.l.b16 %v219
    %v710 = vunpack.c.h.b16 %v219
    %v711 = vunpack.c.l.b16 %v220
    %v712 = vunpack.c.h.b16 %v220
    %v713 = vunpack.c.l.b16 %v221
    %v714 = vunpack.c.h.b16 %v221
    %v715 = vunpack.c.l.b16 %v222
    %v716 = vunpack.c.h.b16 %v222
    %v717 = vunpack.c.l.b16 %v223
    %v718 = vunpack.c.h.b16 %v223
    %v719 = vunpack.c.l.b16 %v224
    %v720 = vunpack.c.h.b16 %v224
    %v721 = vunpack.c.l.b16 %v225
    %v722 = vunpack.c.h.b16 %v225
    %v723 = vunpack.c.l.b16 %v226
    %v724 = vunpack.c.h.b16 %v226
    %v725 = vunpack.c.l.b16 %v227
    %v726 = vunpack.c.h.b16 %v227
    %v727 = vunpack.c.l.b16 %v228
    %v728 = vunpack.c.h.b16 %v228
    %v729 = vunpack.c.l.b16 %v229
    %v730 = vunpack.c.h.b16 %v229
    %v731 = vunpack.c.l.b16 %v230
    %v732 = vunpack.c.h.b16 %v230
    %v733 = vunpack.c.l.b16 %v231
    %v734 = vunpack.c.h.b16 %v231
    %v735 = vunpack.c.l.b16 %v232
    %v736 = vunpack.c.h.b16 %v232
    %v737 = vunpack.c.l.b16 %v233
    %v738 = vunpack.c.h.b16 %v233
    %v739 = vunpack.c.l.b16 %v234
    %v740 = vunpack.c.h.b16 %v234
    %v741 = vunpack.c.l.b16 %v235
    %v742 = vunpack.c.h.b16 %v235
    %v743 = vunpack.c.l.b16 %v236
    %v744 = vunpack.c.h.b16 %v236
    %v745 = vunpack.c.l.b16 %v237
    %v746 = vunpack.c.h.b16 %v237
    %v747 = vunpack.c.l.b16 %v238
    %v748 = vunpack.c.h.b16 %v238
    %v749 = vunpack.c.l.b16 %v239
    %v750 = vunpack.c.h.b16 %v239
    %v751 = vunpack.c.l.b16 %v240
    %v752 = vunpack.c.h.b16 %v240
    %v753 = vunpack.c.l.b16 %v241
    %v754 = vunpack.c.h.b16 %v241
    %v755 = vunpack.c.l.b16 %v242
    %v756 = vunpack.c.h.b16 %v242
    %v757 = vunpack.c.l.b16 %v243
    %v758 = vunpack.c.h.b16 %v243
    %v759 = vunpack.c.l.b16 %v244
    %v760 = vunpack.c.h.b16 %v244
    %v761 = vunpack.c.l.b16 %v245
    %v762 = vunpack.c.h.b16 %v245
    %v763 = vunpack.c.l.b16 %v246
    %v764 = vunpack.c.h.b16 %v246
    %v765 = vunpack.c.l.b16 %v247
    %v766 = vunpack.c.h.b16 %v247
    %v767 = vunpack.c.l.b16 %v248
    %v768 = vunpack.c.h.b16 %v248
    %v769 = vunpack.c.l.b16 %v249
    %v770 = vunpack.c.h.b16 %v249
    %v771 = vunpack.c.l.b16 %v250
    %v772 = vunpack.c.h.b16 %v250
    %v773 = vunpack.c.l.b16 %v251
    %v774 = vunpack.c.h.b16 %v251
    %v775 = vunpack.c.l.b16 %v252
    %v776 = vunpack.c.h.b16 %v252
    %v777 = vunpack.c.l.b16 %v253
    %v778 = vunpack.c.h.b16 %v253
    %v779 = vunpack.c.l.b16 %v254
    %v780 = vunpack.c.h.b16 %v254
    %v781 = vunpack.c.l.b16 %v255
    %v782 = vunpack.c.h.b16 %v255
    %v783 = vunpack.c.l.b16 %v256
    %v784 = vunpack.c.h.b16 %v256
    %v785 = vunpack.c.l.b16 %v257
    %v786 = vunpack.c.h.b16 %v257
    %v787 = vunpack.c.l.b16 %v258
    %v788 = vunpack.c.h.b16 %v258
    %v789 = vunpack.c.l.b16 %v259
    %v790 = vunpack.c.h.b16 %v259
    %v791 = vunpack.c.l.b16 %v260
    %v792 = vunpack.c.h.b16 %v260
    %v793 = vunpack.c.l.b16 %v261
    %v794 = vunpack.c.h.b16 %v261
    %v795 = vunpack.c.l.b16 %v262
    %v796 = vunpack.c.h.b16 %v262
    %v797 = vunpack.c.l.b16 %v263
    %v798 = vunpack.c.h.b16 %v263
    %v799 = vunpack.c.l.b16 %v264
    %v800 = vunpack.c.h.b16 %v264
    %v801 = vunpack.c.l.b16 %v265
    %v802 = vunpack.c.h.b16 %v265
    %v803 = vunpack.c.l.b16 %v266
    %v804 = vunpack.c.h.b16 %v266
    %v805 = vunpack.c.l.b16 %v267
    %v806 = vunpack.c.h.b16 %v267
    %v807 = vunpack.c.l.b16 %v268
    %v808 = vunpack.c.h.b16 %v268
    %v809 = vunpack.c.l.b16 %v269
    %v810 = vunpack.c.h.b16 %v269
    %v811 = vunpack.c.l.b16 %v270
    %v812 = vunpack.c.h.b16 %v270
    %v813 = vunpack.c.l.b16 %v271
    %v814 = vunpack.c.h.b16 %v271
    %v815 = vunpack.c.l.b16 %v272
    %v816 = vunpack.c.h.b16 %v272
    %v817 = vunpack.c.l.b16 %v273
    %v818 = vunpack.c.h.b16 %v273
    %v819 = vunpack.c.l.b16 %v274
    %v820 = vunpack.c.h.b16 %v274
    %v821 = vunpack.c.l.b16 %v275
    %v822 = vunpack.c.h.b16 %v275
    %v823 = vunpack.c.l.b16 %v276
    %v824 = vunpack.c.h.b16 %v276
    %v825 = vunpack.c.l.b16 %v277
    %v826 = vunpack.c.h.b16 %v277
    %v827 = vunpack.c.l.b16 %v278
    %v828 = vunpack.c.h.b16 %v278
    %v829 = vunpack.c.l.b16 %v279
    %v830 = vunpack.c.h.b16 %v279
    %v831 = vunpack.c.l.b16 %v280
    %v832 = vunpack.c.h.b16 %v280
    %v833 = vunpack.c.l.b16 %v281
    %v834 = vunpack.c.h.b16 %v281
    %v835 = vunpack.c.l.b16 %v282
    %v836 = vunpack.c.h.b16 %v282
    %v837 = vunpack.c.l.b16 %v283
    %v838 = vunpack.c.h.b16 %v283
    %v839 = vunpack.c.l.b16 %v284
    %v840 = vunpack.c.h.b16 %v284
    %v841 = vunpack.c.l.b16 %v285
    %v842 = vunpack.c.h.b16 %v285
    %v843 = vunpack.c.l.b16 %v286
    %v844 = vunpack.c.h.b16 %v286
    %v845 = vunpack.c.l.b16 %v287
    %v846 = vunpack.c.h.b16 %v287
    %v847 = vunpack.c.l.b16 %v288
    %v848 = vunpack.c.h.b16 %v288
    %v849 = vunpack.c.l.b16 %v289
    %v850 = vunpack.c.h.b16 %v289
    %v851 = vunpack.c.l.b16 %v290
    %v852 = vunpack.c.h.b16 %v290
    %v853 = vunpack.c.l.b16 %v291
    %v854 = vunpack.c.h.b16 %v291
    %v855 = vunpack.c.l.b16 %v292
    %v856 = vunpack.c.h.b16 %v292
    %v857 = vunpack.c.l.b16 %v293
    %v858 = vunpack.c.h.b16 %v293
    %v859 = vunpack.c.l.b16 %v294
    %v860 = vunpack.c.h.b16 %v294
    %v861 = vunpack.c.l.b16 %v295
    %v862 = vunpack.c.h.b16 %v295
    %v863 = vunpack.c.l.b16 %v296
    %v864 = vunpack.c.h.b16 %v296
    %v865 = vunpack.c.l.b16 %v297
    %v866 = vunpack.c.h.b16 %v297
    %v867 = vunpack.c.l.b16 %v298
    %v868 = vunpack.c.h.b16 %v298
    %v869 = vunpack.c.l.b16 %v299
    %v870 = vunpack.c.h.b16 %v299
    %v871 = vunpack.c.l.b16 %v300
    %v872 = vunpack.c.h.b16 %v300
    %v873 = vunpack.c.l.b16 %v301
    %v874 = vunpack.c.h.b16 %v301
    %v875 = vunpack.c.l.b16 %v302
    %v876 = vunpack.c.h.b16 %v302
    %v877 = vunpack.c.l.b16 %v303
    %v878 = vunpack.c.h.b16 %v303
    %v879 = vunpack.c.l.b16 %v304
    %v880 = vunpack.c.h.b16 %v304
    %v881 = vunpack.c.l.b16 %v305
    %v882 = vunpack.c.h.b16 %v305
    %v883 = vunpack.c.l.b16 %v306
    %v884 = vunpack.c.h.b16 %v306
    %v885 = vunpack.c.l.b16 %v307
    %v886 = vunpack.c.h.b16 %v307
    %v887 = vunpack.c.l.b16 %v308
    %v888 = vunpack.c.h.b16 %v308
    %v889 = vunpack.c.l.b16 %v309
    %v890 = vunpack.c.h.b16 %v309
    %v891 = vunpack.c.l.b16 %v310
    %v892 = vunpack.c.h.b16 %v310
    %v893 = vunpack.c.l.b16 %v311
    %v894 = vunpack.c.h.b16 %v311
    %v895 = vunpack.c.l.b16 %v312
    %v896 = vunpack.c.h.b16 %v312
    %v897 = vunpack.c.l.b16 %v313
    %v898 = vunpack.c.h.b16 %v313
    %v899 = vunpack.c.l.b16 %v314
    %v900 = vunpack.c.h.b16 %v314
    %v901 = vunpack.c.l.b16 %v315
    %v902 = vunpack.c.h.b16 %v315
    %v903 = vunpack.c.l.b16 %v316
    %v904 = vunpack.c.h.b16 %v316
    %v905 = vunpack.c.l.b16 %v317
    %v906 = vunpack.c.h.b16 %v317
    %v907 = vunpack.c.l.b16 %v318
    %v908 = vunpack.c.h.b16 %v318
    %v909 = vunpack.c.l.b16 %v319
    %v910 = vunpack.c.h.b16 %v319
    %v911 = vunpack.c.l.b16 %v320
    %v912 = vunpack.c.h.b16 %v320
    %v913 = vunpack.c.l.b16 %v321
    %v914 = vunpack.c.h.b16 %v321
    %v915 = vunpack.c.l.b16 %v322
    %v916 = vunpack.c.h.b16 %v322
    %v917 = vunpack.c.l.b16 %v323
    %v918 = vunpack.c.h.b16 %v323
    %v919 = vunpack.c.l.b16 %v324
    %v920 = vunpack.c.h.b16 %v324
    %v921 = vunpack.c.l.b16 %v325
    %v922 = vunpack.c.h.b16 %v325
    %v923 = vunpack.c.l.b16 %v326
    %v924 = vunpack.c.h.b16 %v326
    %v925 = vpack.c.b16 %v537, %v533
    %v926 = vpack.c.b16 %v538, %v534
    %v927 = vpack.c.b16 %v539, %v535
    %v928 = vpack.c.b16 %v540, %v536
    %v929 = vpack.c.b16 %v545, %v541
    %v930 = vpack.c.b16 %v546, %v542
    %v931 = vpack.c.b16 %v547, %v543
    %v932 = vpack.c.b16 %v548, %v544
    %v933 = vpack.c.b16 %v553, %v549
    %v934 = vpack.c.b16 %v554, %v550
    %v935 = vpack.c.b16 %v555, %v551
    %v936 = vpack.c.b16 %v556, %v552
    %v937 = vpack.c.b16 %v561, %v557
    %v938 = vpack.c.b16 %v562, %v558
    %v939 = vpack.c.b16 %v563, %v559
    %v940 = vpack.c.b16 %v564, %v560
    %v941 = vpack.c.b16 %v569, %v565
    %v942 = vpack.c.b16 %v570, %v566
    %v943 = vpack.c.b16 %v571, %v567
    %v944 = vpack.c.b16 %v572, %v568
    %v945 = vpack.c.b16 %v577, %v573
    %v946 = vpack.c.b16 %v578, %v574
    %v947 = vpack.c.b16 %v579, %v575
    %v948 = vpack.c.b16 %v580, %v576
    %v949 = vpack.c.b16 %v585, %v581
    %v950 = vpack.c.b16 %v586, %v582
    %v951 = vpack.c.b16 %v587, %v583
    %v952 = vpack.c.b16 %v588, %v584
    %v953 = vpack.c.b16 %v593, %v589
    %v954 = vpack.c.b16 %v594, %v590
    %v955 = vpack.c.b16 %v595, %v591
    %v956 = vpack.c.b16 %v596, %v592
    %v957 = vpack.c.b16 %v601, %v597
    %v958 = vpack.c.b16 %v602, %v598
    %v959 = vpack.c.b16 %v603, %v599
    %v960 = vpack.c.b16 %v604, %v600
    %v961 = vpack.c.b16 %v609, %v605
    %v962 = vpack.c.b16 %v610, %v606
    %v963 = vpack.c.b16 %v611, %v607
    %v964 = vpack.c.b16 %v612, %v608
    %v965 = vpack.c.b16 %v617, %v613
    %v966 = vpack.c.b16 %v618, %v614
    %v967 = vpack.c.b16 %v619, %v615
    %v968 = vpack.c.b16 %v620, %v616
    %v969 = vpack.c.b16 %v625, %v621
    %v970 = vpack.c.b16 %v626, %v622
    %v971 = vpack.c.b16 %v627, %v623
    %v972 = vpack.c.b16 %v628, %v624
    %v973 = vpack.c.b16 %v633, %v629
    %v974 = vpack.c.b16 %v634, %v630
    %v975 = vpack.c.b16 %v635, %v631
    %v976 = vpack.c.b16 %v636, %v632
    %v977 = vpack.c.b16 %v641, %v637
    %v978 = vpack.c.b16 %v642, %v638
    %v979 = vpack.c.b16 %v643, %v639
    %v980 = vpack.c.b16 %v644, %v640
    %v981 = vpack.c.b16 %v649, %v645
    %v982 = vpack.c.b16 %v650, %v646
    %v983 = vpack.c.b16 %v651, %v647
    %v984 = vpack.c.b16 %v652, %v648
    %v985 = vpack.c.b16 %v657, %v653
    %v986 = vpack.c.b16 %v658, %v654
    %v987 = vpack.c.b16 %v659, %v655
    %v988 = vpack.c.b16 %v660, %v656
    %v989 = vpack.c.b16 %v665, %v661
    %v990 = vpack.c.b16 %v666, %v662
    %v991 = vpack.c.b16 %v667, %v663
    %v992 = vpack.c.b16 %v668, %v664
    %v993 = vpack.c.b16 %v673, %v669
    %v994 = vpack.c.b16 %v674, %v670
    %v995 = vpack.c.b16 %v675, %v671
    %v996 = vpack.c.b16 %v676, %v672
    %v997 = vpack.c.b16 %v681, %v677
    %v998 = vpack.c.b16 %v682, %v678
    %v999 = vpack.c.b16 %v683, %v679
    %v1000 = vpack.c.b16 %v684, %v680
    %v1001 = vpack.c.b16 %v689, %v685
    %v1002 = vpack.c.b16 %v690, %v686
    %v1003 = vpack.c.b16 %v691, %v687
    %v1004 = vpack.c.b16 %v692, %v688
    %v1005 = vpack.c.b16 %v697, %v693
    %v1006 = vpack.c.b16 %v698, %v694
    %v1007 = vpack.c.b16 %v699, %v695
    %v1008 = vpack.c.b16 %v700, %v696
    %v1009 = vpack.c.b16 %v705, %v701
    %v1010 = vpack.c.b16 %v706, %v702
    %v1011 = vpack.c.b16 %v707, %v703
    %v1012 = vpack.c.b16 %v708, %v704
    %v1013 = vpack.c.b16 %v713, %v709
    %v1014 = vpack.c.b16 %v714, %v710
    %v1015 = vpack.c.b16 %v715, %v711
    %v1016 = vpack.c.b16 %v716, %v712
    %v1017 = vpack.c.b16 %v721, %v717
    %v1018 = vpack.c.b16 %v722, %v718
    %v1019 = vpack.c.b16 %v723, %v719
    %v1020 = vpack.c.b16 %v724, %v720
    %v1021 = vpack.c.b16 %v729, %v725
    %v1022 = vpack.c.b16 %v730, %v726
    %v1023 = vpack.c.b16 %v731, %v727
    %v1024 = vpack.c.b16 %v732, %v728
    %v1025 = vpack.c.b16 %v737, %v733
    %v1026 = vpack.c.b16 %v738, %v734
    %v1027 = vpack.c.b16 %v739, %v735
    %v1028 = vpack.c.b16 %v740, %v736
    %v1029 = vpack.c.b16 %v745, %v741
    %v1030 = vpack.c.b16 %v746, %v742
    %v1031 = vpack.c.b16 %v747, %v743
    %v1032 = vpack.c.b16 %v748, %v744
    %v1033 = vpack.c.b16 %v753, %v749
    %v1034 = vpack.c.b16 %v754, %v750
    %v1035 = vpack.c.b16 %v755, %v751
    %v1036 = vpack.c.b16 %v756, %v752
    %v1037 = vpack.c.b16 %v761, %v757
    %v1038 = vpack.c.b16 %v762, %v758
    %v1039 = vpack.c.b16 %v763, %v759
    %v1040 = vpack.c.b16 %v764, %v760
    %v1041 = vpack.c.b16 %v769, %v765
    %v1042 = vpack.c.b16 %v770, %v766
    %v1043 = vpack.c.b16 %v771, %v767
    %v1044 = vpack.c.b16 %v772, %v768
    %v1045 = vpack.c.b16 %v777, %v773
    %v1046 = vpack.c.b16 %v778, %v774
    %v1047 = vpack.c.b16 %v779, %v775
    %v1048 = vpack.c.b16 %v780, %v776
    %v1049 = vpack.c.b16 %v785, %v781
    %v1050 = vpack.c.b16 %v786, %v782
    %v1051 = vpack.c.b16 %v787, %v783
    %v1052 = vpack.c.b16 %v788, %v784
    %v1053 = vpack.c.b16 %v793, %v789
    %v1054 = vpack.c.b16 %v794, %v790
    %v1055 = vpack.c.b16 %v795, %v791
    %v1056 = vpack.c.b16 %v796, %v792
    %v1057 = vpack.c.b16 %v801, %v797
    %v1058 = vpack.c.b16 %v802, %v798
    %v1059 = vpack.c.b16 %v803, %v799
    %v1060 = vpack.c.b16 %v804, %v800
    %v1061 = vpack.c.b16 %v809, %v805
    %v1062 = vpack.c.b16 %v810, %v806
    %v1063 = vpack.c.b16 %v811, %v807
    %v1064 = vpack.c.b16 %v812, %v808
    %v1065 = vpack.c.b16 %v817, %v813
    %v1066 = vpack.c.b16 %v818, %v814
    %v1067 = vpack.c.b16 %v819, %v815
    %v1068 = vpack.c.b16 %v820, %v816
    %v1069 = vpack.c.b16 %v825, %v821
    %v1070 = vpack.c.b16 %v826, %v822
    %v1071 = vpack.c.b16 %v827, %v823
    %v1072 = vpack.c.b16 %v828, %v824
    %v1073 = vpack.c.b16 %v833, %v829
    %v1074 = vpack.c.b16 %v834, %v830
    %v1075 = vpack.c.b16 %v835, %v831
    %v1076 = vpack.c.b16 %v836, %v832
    %v1077 = vpack.c.b16 %v841, %v837
    %v1078 = vpack.c.b16 %v842, %v838
    %v1079 = vpack.c.b16 %v843, %v839
    %v1080 = vpack.c.b16 %v844, %v840
    %v1081 = vpack.c.b16 %v849, %v845
    %v1082 = vpack.c.b16 %v850, %v846
    %v1083 = vpack.c.b16 %v851, %v847
    %v1084 = vpack.c.b16 %v852, %v848
    %v1085 = vpack.c.b16 %v857, %v853
    %v1086 = vpack.c.b16 %v858, %v854
    %v1087 = vpack.c.b16 %v859, %v855
    %v1088 = vpack.c.b16 %v860, %v856
    %v1089 = vpack.c.b16 %v865, %v861
    %v1090 = vpack.c.b16 %v866, %v862
    %v1091 = vpack.c.b16 %v867, %v863
    %v1092 = vpack.c.b16 %v868, %v864
    %v1093 = vpack.c.b16 %v873, %v869
    %v1094 = vpack.c.b16 %v874, %v870
    %v1095 = vpack.c.b16 %v875, %v871
    %v1096 = vpack.c.b16 %v876, %v872
    %v1097 = vpack.c.b16 %v881, %v877
    %v1098 = vpack.c.b16 %v882, %v878
    %v1099 = vpack.c.b16 %v883, %v879
    %v1100 = vpack.c.b16 %v884, %v880
    %v1101 = vpack.c.b16 %v889, %v885
    %v1102 = vpack.c.b16 %v890, %v886
    %v1103 = vpack.c.b16 %v891, %v887
    %v1104 = vpack.c.b16 %v892, %v888
    %v1105 = vpack.c.b16 %v897, %v893
    %v1106 = vpack.c.b16 %v898, %v894
    %v1107 = vpack.c.b16 %v899, %v895
    %v1108 = vpack.c.b16 %v900, %v896
    %v1109 = vpack.c.b16 %v905, %v901
    %v1110 = vpack.c.b16 %v906, %v902
    %v1111 = vpack.c.b16 %v907, %v903
    %v1112 = vpack.c.b16 %v908, %v904
    %v1113 = vpack.c.b16 %v913, %v909
    %v1114 = vpack.c.b16 %v914, %v910
    %v1115 = vpack.c.b16 %v915, %v911
    %v1116 = vpack.c.b16 %v916, %v912
    %v1117 = vpack.c.b16 %v921, %v917
    %v1118 = vpack.c.b16 %v922, %v918
    %v1119 = vpack.c.b16 %v923, %v919
    %v1120 = vpack.c.b16 %v924, %v920
    %vm1317 = vcmask 130048
    %v1319 = vsel %vm1317, %v130, 0
    %1321 = vmatpush.bf16.msra.mxu0 %v953
    %1322 = vmatpush.bf16.msra.mxu0 %v949
    %1323 = vmatpush.bf16.msra.mxu0 %v945
    %1324 = vmatpush.bf16.msra.mxu0 %v941
    %1325 = vmatpush.bf16.msra.mxu0 %v937
    %1326 = vmatpush.bf16.msra.mxu0 %v933
    %1327 = vmatpush.bf16.msra.mxu0 %v929
    %1328 = vmatpush.bf16.msra.mxu0 %v925
    %1329 = vmatmul.bf16.gmra.mxu0 %v124
    %v1330 = vpop.f32.mrf.mxu0
    %v1331 = vadd.f32 %v329, %v1330
    %v1332 = vpop.f32.mrf.mxu0
    %1333 = vdwg.mxu0
    %1334 = vmatpush.bf16.msra.mxu0 %v985
    %1335 = vmatpush.bf16.msra.mxu0 %v981
    %1336 = vmatpush.bf16.msra.mxu0 %v977
    %1337 = vmatpush.bf16.msra.mxu0 %v973
    %1338 = vmatpush.bf16.msra.mxu0 %v969
    %1339 = vmatpush.bf16.msra.mxu0 %v965
    %1340 = vmatpush.bf16.msra.mxu0 %v961
    %1341 = vmatpush.bf16.msra.mxu0 %v957
    %1342 = vmatmul.bf16.gmra.mxu0 %v125
    %v1343 = vpop.f32.mrf.mxu0
    %v1344 = vadd.f32 %v1331, %v1343
    %v1345 = vpop.f32.mrf.mxu0
    %1346 = vdwg.mxu0
    %1347 = vmatpush.bf16.msra.mxu0 %v1017
    %1348 = vmatpush.bf16.msra.mxu0 %v1013
    %1349 = vmatpush.bf16.msra.mxu0 %v1009
    %1350 = vmatpush.bf16.msra.mxu0 %v1005
    %1351 = vmatpush.bf16.msra.mxu0 %v1001
    %1352 = vmatpush.bf16.msra.mxu0 %v997
    %1353 = vmatpush.bf16.msra.mxu0 %v993
    %1354 = vmatpush.bf16.msra.mxu0 %v989
    %1355 = vmatmul.bf16.gmra.mxu0 %v126
    %v1356 = vpop.f32.mrf.mxu0
    %v1357 = vadd.f32 %v1344, %v1356
    %v1358 = vpop.f32.mrf.mxu0
    %1359 = vdwg.mxu0
    %1360 = vmatpush.bf16.msra.mxu0 %v1049
    %1361 = vmatpush.bf16.msra.mxu0 %v1045
    %1362 = vmatpush.bf16.msra.mxu0 %v1041
    %1363 = vmatpush.bf16.msra.mxu0 %v1037
    %1364 = vmatpush.bf16.msra.mxu0 %v1033
    %1365 = vmatpush.bf16.msra.mxu0 %v1029
    %1366 = vmatpush.bf16.msra.mxu0 %v1025
    %1367 = vmatpush.bf16.msra.mxu0 %v1021
    %1368 = vmatmul.bf16.gmra.mxu0 %v127
    %v1369 = vpop.f32.mrf.mxu0
    %v1370 = vadd.f32 %v1357, %v1369
    %v1371 = vpop.f32.mrf.mxu0
    %1372 = vdwg.mxu0
    %1373 = vmatpush.bf16.msra.mxu0 %v1081
    %1374 = vmatpush.bf16.msra.mxu0 %v1077
    %1375 = vmatpush.bf16.msra.mxu0 %v1073
    %1376 = vmatpush.bf16.msra.mxu0 %v1069
    %1377 = vmatpush.bf16.msra.mxu0 %v1065
    %1378 = vmatpush.bf16.msra.mxu0 %v1061
    %1379 = vmatpush.bf16.msra.mxu0 %v1057
    %1380 = vmatpush.bf16.msra.mxu0 %v1053
    %1381 = vmatmul.bf16.gmra.mxu0 %v128
    %v1382 = vpop.f32.mrf.mxu0
    %v1383 = vadd.f32 %v1370, %v1382
    %v1384 = vpop.f32.mrf.mxu0
    %1385 = vdwg.mxu0
    %1386 = vmatpush.bf16.msra.mxu0 %v1113
    %1387 = vmatpush.bf16.msra.mxu0 %v1109
    %1388 = vmatpush.bf16.msra.mxu0 %v1105
    %1389 = vmatpush.bf16.msra.mxu0 %v1101
    %1390 = vmatpush.bf16.msra.mxu0 %v1097
    %1391 = vmatpush.bf16.msra.mxu0 %v1093
    %1392 = vmatpush.bf16.msra.mxu0 %v1089
    %1393 = vmatpush.bf16.msra.mxu0 %v1085
    %1394 = vmatmul.bf16.gmra.mxu0 %v129
    %v1395 = vpop.f32.mrf.mxu0
    %v1396 = vadd.f32 %v1383, %v1395
    %v1397 = vpop.f32.mrf.mxu0
    %1398 = vdwg.mxu0
    %1399 = vmatpush.bf16.msra.mxu0 0
    %1400 = vmatpush.bf16.msra.mxu0 0
    %1401 = vmatpush.bf16.msra.mxu0 0
    %1402 = vmatpush.bf16.msra.mxu0 0
    %1403 = vmatpush.bf16.msra.mxu0 0
    %1404 = vmatpush.bf16.msra.mxu0 0
    %1405 = vmatpush.bf16.msra.mxu0 0
    %1406 = vmatpush.bf16.msra.mxu0 %v1117
    %1407 = vmatmul.bf16.gmra.mxu0 %v1319
    %v1408 = vpop.f32.mrf.mxu0
    %v1409 = vadd.f32 %v1396, %v1408
    %v1410 = vpop.f32.mrf.mxu0
    %1411 = vdwg.mxu0
    %1412 = vmatpush.bf16.msra.mxu0 %v954
    %1413 = vmatpush.bf16.msra.mxu0 %v950
    %1414 = vmatpush.bf16.msra.mxu0 %v946
    %1415 = vmatpush.bf16.msra.mxu0 %v942
    %1416 = vmatpush.bf16.msra.mxu0 %v938
    %1417 = vmatpush.bf16.msra.mxu0 %v934
    %1418 = vmatpush.bf16.msra.mxu0 %v930
    %1419 = vmatpush.bf16.msra.mxu0 %v926
    %1420 = vmatmul.bf16.gmra.mxu0 %v124
    %v1421 = vpop.f32.mrf.mxu0
    %v1422 = vadd.f32 %v330, %v1421
    %v1423 = vpop.f32.mrf.mxu0
    %1424 = vdwg.mxu0
    %1425 = vmatpush.bf16.msra.mxu0 %v986
    %1426 = vmatpush.bf16.msra.mxu0 %v982
    %1427 = vmatpush.bf16.msra.mxu0 %v978
    %1428 = vmatpush.bf16.msra.mxu0 %v974
    %1429 = vmatpush.bf16.msra.mxu0 %v970
    %1430 = vmatpush.bf16.msra.mxu0 %v966
    %1431 = vmatpush.bf16.msra.mxu0 %v962
    %1432 = vmatpush.bf16.msra.mxu0 %v958
    %1433 = vmatmul.bf16.gmra.mxu0 %v125
    %v1434 = vpop.f32.mrf.mxu0
    %v1435 = vadd.f32 %v1422, %v1434
    %v1436 = vpop.f32.mrf.mxu0
    %1437 = vdwg.mxu0
    %1438 = vmatpush.bf16.msra.mxu0 %v1018
    %1439 = vmatpush.bf16.msra.mxu0 %v1014
    %1440 = vmatpush.bf16.msra.mxu0 %v1010
    %1441 = vmatpush.bf16.msra.mxu0 %v1006
    %1442 = vmatpush.bf16.msra.mxu0 %v1002
    %1443 = vmatpush.bf16.msra.mxu0 %v998
    %1444 = vmatpush.bf16.msra.mxu0 %v994
    %1445 = vmatpush.bf16.msra.mxu0 %v990
    %1446 = vmatmul.bf16.gmra.mxu0 %v126
    %v1447 = vpop.f32.mrf.mxu0
    %v1448 = vadd.f32 %v1435, %v1447
    %v1449 = vpop.f32.mrf.mxu0
    %1450 = vdwg.mxu0
    %1451 = vmatpush.bf16.msra.mxu0 %v1050
    %1452 = vmatpush.bf16.msra.mxu0 %v1046
    %1453 = vmatpush.bf16.msra.mxu0 %v1042
    %1454 = vmatpush.bf16.msra.mxu0 %v1038
    %1455 = vmatpush.bf16.msra.mxu0 %v1034
    %1456 = vmatpush.bf16.msra.mxu0 %v1030
    %1457 = vmatpush.bf16.msra.mxu0 %v1026
    %1458 = vmatpush.bf16.msra.mxu0 %v1022
    %1459 = vmatmul.bf16.gmra.mxu0 %v127
    %v1460 = vpop.f32.mrf.mxu0
    %v1461 = vadd.f32 %v1448, %v1460
    %v1462 = vpop.f32.mrf.mxu0
    %1463 = vdwg.mxu0
    %1464 = vmatpush.bf16.msra.mxu0 %v1082
    %1465 = vmatpush.bf16.msra.mxu0 %v1078
    %1466 = vmatpush.bf16.msra.mxu0 %v1074
    %1467 = vmatpush.bf16.msra.mxu0 %v1070
    %1468 = vmatpush.bf16.msra.mxu0 %v1066
    %1469 = vmatpush.bf16.msra.mxu0 %v1062
    %1470 = vmatpush.bf16.msra.mxu0 %v1058
    %1471 = vmatpush.bf16.msra.mxu0 %v1054
    %1472 = vmatmul.bf16.gmra.mxu0 %v128
    %v1473 = vpop.f32.mrf.mxu0
    %v1474 = vadd.f32 %v1461, %v1473
    %v1475 = vpop.f32.mrf.mxu0
    %1476 = vdwg.mxu0
    %1477 = vmatpush.bf16.msra.mxu0 %v1114
    %1478 = vmatpush.bf16.msra.mxu0 %v1110
    %1479 = vmatpush.bf16.msra.mxu0 %v1106
    %1480 = vmatpush.bf16.msra.mxu0 %v1102
    %1481 = vmatpush.bf16.msra.mxu0 %v1098
    %1482 = vmatpush.bf16.msra.mxu0 %v1094
    %1483 = vmatpush.bf16.msra.mxu0 %v1090
    %1484 = vmatpush.bf16.msra.mxu0 %v1086
    %1485 = vmatmul.bf16.gmra.mxu0 %v129
    %v1486 = vpop.f32.mrf.mxu0
    %v1487 = vadd.f32 %v1474, %v1486
    %v1488 = vpop.f32.mrf.mxu0
    %1489 = vdwg.mxu0
    %1490 = vmatpush.bf16.msra.mxu0 0
    %1491 = vmatpush.bf16.msra.mxu0 0
    %1492 = vmatpush.bf16.msra.mxu0 0
    %1493 = vmatpush.bf16.msra.mxu0 0
    %1494 = vmatpush.bf16.msra.mxu0 0
    %1495 = vmatpush.bf16.msra.mxu0 0
    %1496 = vmatpush.bf16.msra.mxu0 0
    %1497 = vmatpush.bf16.msra.mxu0 %v1118
    %1498 = vmatmul.bf16.gmra.mxu0 %v1319
    %v1499 = vpop.f32.mrf.mxu0
    %v1500 = vadd.f32 %v1487, %v1499
    %v1501 = vpop.f32.mrf.mxu0
    %1502 = vdwg.mxu0
    %1503 = vmatpush.bf16.msra.mxu0 %v955
    %1504 = vmatpush.bf16.msra.mxu0 %v951
    %1505 = vmatpush.bf16.msra.mxu0 %v947
    %1506 = vmatpush.bf16.msra.mxu0 %v943
    %1507 = vmatpush.bf16.msra.mxu0 %v939
    %1508 = vmatpush.bf16.msra.mxu0 %v935
    %1509 = vmatpush.bf16.msra.mxu0 %v931
    %1510 = vmatpush.bf16.msra.mxu0 %v927
    %1511 = vmatmul.bf16.gmra.mxu0 %v124
    %v1512 = vpop.f32.mrf.mxu0
    %v1513 = vadd.f32 %v331, %v1512
    %v1514 = vpop.f32.mrf.mxu0
    %1515 = vdwg.mxu0
    %1516 = vmatpush.bf16.msra.mxu0 %v987
    %1517 = vmatpush.bf16.msra.mxu0 %v983
    %1518 = vmatpush.bf16.msra.mxu0 %v979
    %1519 = vmatpush.bf16.msra.mxu0 %v975
    %1520 = vmatpush.bf16.msra.mxu0 %v971
    %1521 = vmatpush.bf16.msra.mxu0 %v967
    %1522 = vmatpush.bf16.msra.mxu0 %v963
    %1523 = vmatpush.bf16.msra.mxu0 %v959
    %1524 = vmatmul.bf16.gmra.mxu0 %v125
    %v1525 = vpop.f32.mrf.mxu0
    %v1526 = vadd.f32 %v1513, %v1525
    %v1527 = vpop.f32.mrf.mxu0
    %1528 = vdwg.mxu0
    %1529 = vmatpush.bf16.msra.mxu0 %v1019
    %1530 = vmatpush.bf16.msra.mxu0 %v1015
    %1531 = vmatpush.bf16.msra.mxu0 %v1011
    %1532 = vmatpush.bf16.msra.mxu0 %v1007
    %1533 = vmatpush.bf16.msra.mxu0 %v1003
    %1534 = vmatpush.bf16.msra.mxu0 %v999
    %1535 = vmatpush.bf16.msra.mxu0 %v995
    %1536 = vmatpush.bf16.msra.mxu0 %v991
    %1537 = vmatmul.bf16.gmra.mxu0 %v126
    %v1538 = vpop.f32.mrf.mxu0
    %v1539 = vadd.f32 %v1526, %v1538
    %v1540 = vpop.f32.mrf.mxu0
    %1541 = vdwg.mxu0
    %1542 = vmatpush.bf16.msra.mxu0 %v1051
    %1543 = vmatpush.bf16.msra.mxu0 %v1047
    %1544 = vmatpush.bf16.msra.mxu0 %v1043
    %1545 = vmatpush.bf16.msra.mxu0 %v1039
    %1546 = vmatpush.bf16.msra.mxu0 %v1035
    %1547 = vmatpush.bf16.msra.mxu0 %v1031
    %1548 = vmatpush.bf16.msra.mxu0 %v1027
    %1549 = vmatpush.bf16.msra.mxu0 %v1023
    %1550 = vmatmul.bf16.gmra.mxu0 %v127
    %v1551 = vpop.f32.mrf.mxu0
    %v1552 = vadd.f32 %v1539, %v1551
    %v1553 = vpop.f32.mrf.mxu0
    %1554 = vdwg.mxu0
    %1555 = vmatpush.bf16.msra.mxu0 %v1083
    %1556 = vmatpush.bf16.msra.mxu0 %v1079
    %1557 = vmatpush.bf16.msra.mxu0 %v1075
    %1558 = vmatpush.bf16.msra.mxu0 %v1071
    %1559 = vmatpush.bf16.msra.mxu0 %v1067
    %1560 = vmatpush.bf16.msra.mxu0 %v1063
    %1561 = vmatpush.bf16.msra.mxu0 %v1059
    %1562 = vmatpush.bf16.msra.mxu0 %v1055
    %1563 = vmatmul.bf16.gmra.mxu0 %v128
    %v1564 = vpop.f32.mrf.mxu0
    %v1565 = vadd.f32 %v1552, %v1564
    %v1566 = vpop.f32.mrf.mxu0
    %1567 = vdwg.mxu0
    %1568 = vmatpush.bf16.msra.mxu0 %v1115
    %1569 = vmatpush.bf16.msra.mxu0 %v1111
    %1570 = vmatpush.bf16.msra.mxu0 %v1107
    %1571 = vmatpush.bf16.msra.mxu0 %v1103
    %1572 = vmatpush.bf16.msra.mxu0 %v1099
    %1573 = vmatpush.bf16.msra.mxu0 %v1095
    %1574 = vmatpush.bf16.msra.mxu0 %v1091
    %1575 = vmatpush.bf16.msra.mxu0 %v1087
    %1576 = vmatmul.bf16.gmra.mxu0 %v129
    %v1577 = vpop.f32.mrf.mxu0
    %v1578 = vadd.f32 %v1565, %v1577
    %v1579 = vpop.f32.mrf.mxu0
    %1580 = vdwg.mxu0
    %1581 = vmatpush.bf16.msra.mxu0 0
    %1582 = vmatpush.bf16.msra.mxu0 0
    %1583 = vmatpush.bf16.msra.mxu0 0
    %1584 = vmatpush.bf16.msra.mxu0 0
    %1585 = vmatpush.bf16.msra.mxu0 0
    %1586 = vmatpush.bf16.msra.mxu0 0
    %1587 = vmatpush.bf16.msra.mxu0 0
    %1588 = vmatpush.bf16.msra.mxu0 %v1119
    %1589 = vmatmul.bf16.gmra.mxu0 %v1319
    %v1590 = vpop.f32.mrf.mxu0
    %v1591 = vadd.f32 %v1578, %v1590
    %v1592 = vpop.f32.mrf.mxu0
    %1593 = vdwg.mxu0
    %1594 = vmatpush.bf16.msra.mxu0 %v956
    %1595 = vmatpush.bf16.msra.mxu0 %v952
    %1596 = vmatpush.bf16.msra.mxu0 %v948
    %1597 = vmatpush.bf16.msra.mxu0 %v944
    %1598 = vmatpush.bf16.msra.mxu0 %v940
    %1599 = vmatpush.bf16.msra.mxu0 %v936
    %1600 = vmatpush.bf16.msra.mxu0 %v932
    %1601 = vmatpush.bf16.msra.mxu0 %v928
    %1602 = vmatmul.bf16.gmra.mxu0 %v124
    %v1603 = vpop.f32.mrf.mxu0
    %v1604 = vadd.f32 %v332, %v1603
    %v1605 = vpop.f32.mrf.mxu0
    %1606 = vdwg.mxu0
    %1607 = vmatpush.bf16.msra.mxu0 %v988
    %1608 = vmatpush.bf16.msra.mxu0 %v984
    %1609 = vmatpush.bf16.msra.mxu0 %v980
    %1610 = vmatpush.bf16.msra.mxu0 %v976
    %1611 = vmatpush.bf16.msra.mxu0 %v972
    %1612 = vmatpush.bf16.msra.mxu0 %v968
    %1613 = vmatpush.bf16.msra.mxu0 %v964
    %1614 = vmatpush.bf16.msra.mxu0 %v960
    %1615 = vmatmul.bf16.gmra.mxu0 %v125
    %v1616 = vpop.f32.mrf.mxu0
    %v1617 = vadd.f32 %v1604, %v1616
    %v1618 = vpop.f32.mrf.mxu0
    %1619 = vdwg.mxu0
    %1620 = vmatpush.bf16.msra.mxu0 %v1020
    %1621 = vmatpush.bf16.msra.mxu0 %v1016
    %1622 = vmatpush.bf16.msra.mxu0 %v1012
    %1623 = vmatpush.bf16.msra.mxu0 %v1008
    %1624 = vmatpush.bf16.msra.mxu0 %v1004
    %1625 = vmatpush.bf16.msra.mxu0 %v1000
    %1626 = vmatpush.bf16.msra.mxu0 %v996
    %1627 = vmatpush.bf16.msra.mxu0 %v992
    %1628 = vmatmul.bf16.gmra.mxu0 %v126
    %v1629 = vpop.f32.mrf.mxu0
    %v1630 = vadd.f32 %v1617, %v1629
    %v1631 = vpop.f32.mrf.mxu0
    %1632 = vdwg.mxu0
    %1633 = vmatpush.bf16.msra.mxu0 %v1052
    %1634 = vmatpush.bf16.msra.mxu0 %v1048
    %1635 = vmatpush.bf16.msra.mxu0 %v1044
    %1636 = vmatpush.bf16.msra.mxu0 %v1040
    %1637 = vmatpush.bf16.msra.mxu0 %v1036
    %1638 = vmatpush.bf16.msra.mxu0 %v1032
    %1639 = vmatpush.bf16.msra.mxu0 %v1028
    %1640 = vmatpush.bf16.msra.mxu0 %v1024
    %1641 = vmatmul.bf16.gmra.mxu0 %v127
    %v1642 = vpop.f32.mrf.mxu0
    %v1643 = vadd.f32 %v1630, %v1642
    %v1644 = vpop.f32.mrf.mxu0
    %1645 = vdwg.mxu0
    %1646 = vmatpush.bf16.msra.mxu0 %v1084
    %1647 = vmatpush.bf16.msra.mxu0 %v1080
    %1648 = vmatpush.bf16.msra.mxu0 %v1076
    %1649 = vmatpush.bf16.msra.mxu0 %v1072
    %1650 = vmatpush.bf16.msra.mxu0 %v1068
    %1651 = vmatpush.bf16.msra.mxu0 %v1064
    %1652 = vmatpush.bf16.msra.mxu0 %v1060
    %1653 = vmatpush.bf16.msra.mxu0 %v1056
    %1654 = vmatmul.bf16.gmra.mxu0 %v128
    %v1655 = vpop.f32.mrf.mxu0
    %v1656 = vadd.f32 %v1643, %v1655
    %v1657 = vpop.f32.mrf.mxu0
    %1658 = vdwg.mxu0
    %1659 = vmatpush.bf16.msra.mxu0 %v1116
    %1660 = vmatpush.bf16.msra.mxu0 %v1112
    %1661 = vmatpush.bf16.msra.mxu0 %v1108
    %1662 = vmatpush.bf16.msra.mxu0 %v1104
    %1663 = vmatpush.bf16.msra.mxu0 %v1100
    %1664 = vmatpush.bf16.msra.mxu0 %v1096
    %1665 = vmatpush.bf16.msra.mxu0 %v1092
    %1666 = vmatpush.bf16.msra.mxu0 %v1088
    %1667 = vmatmul.bf16.gmra.mxu0 %v129
    %v1668 = vpop.f32.mrf.mxu0
    %v1669 = vadd.f32 %v1656, %v1668
    %v1670 = vpop.f32.mrf.mxu0
    %1671 = vdwg.mxu0
    %1672 = vmatpush.bf16.msra.mxu0 0
    %1673 = vmatpush.bf16.msra.mxu0 0
    %1674 = vmatpush.bf16.msra.mxu0 0
    %1675 = vmatpush.bf16.msra.mxu0 0
    %1676 = vmatpush.bf16.msra.mxu0 0
    %1677 = vmatpush.bf16.msra.mxu0 0
    %1678 = vmatpush.bf16.msra.mxu0 0
    %1679 = vmatpush.bf16.msra.mxu0 %v1120
    %1680 = vmatmul.bf16.gmra.mxu0 %v1319
    %v1681 = vpop.f32.mrf.mxu0
    %v1682 = vadd.f32 %v1669, %v1681
    %v1683 = vpop.f32.mrf.mxu0
    %1684 = vdwg.mxu0
    %v1685 = vpack.c.bf16 %v1500, %v1409
    %v1686 = vpack.c.bf16 %v1682, %v1591
    %v1687 = vunpack.c.l.bf16 %v1685
    %v1688 = vunpack.c.h.bf16 %v1685
    %v1689 = vunpack.c.l.bf16 %v1686
    %v1690 = vunpack.c.h.bf16 %v1686
    %v1691 = vmul.f32 %v1687, 0.20019531
    %v1692 = vmul.f32 %v1688, 0.20019531
    %v1693 = vmul.f32 %v1689, 0.20019531
    %v1694 = vmul.f32 %v1690, 0.20019531
    %v1695 = vpack.c.bf16 %v1692, %v1691
    %v1696 = vpack.c.bf16 %v1694, %v1693
    %v1697 = vunpack.c.l.bf16 %v1695
    %v1698 = vunpack.c.h.bf16 %v1695
    %v1699 = vunpack.c.l.bf16 %v1696
    %v1700 = vunpack.c.h.bf16 %v1696
    %v1701 = vmax.f32 %v1687, %v1697
    %v1702 = vmax.f32 %v1688, %v1698
    %v1703 = vmax.f32 %v1689, %v1699
    %v1704 = vmax.f32 %v1690, %v1700
    %v1705 = vpack.c.bf16 %v1701, %v1701
    %v1706 = vpack.c.bf16 %v1702, %v1702
    %v1707 = vpack.c.bf16 %v1703, %v1703
    %v1708 = vpack.c.bf16 %v1704, %v1704
    %v1709 = vld [vmem:[#allocation8] sm:$0xff]
    %v1710 = vld [vmem:[#allocation8 + $0x8] sm:$0xff]
    %v1711 = vld [vmem:[#allocation8 + $0x10] sm:$0xff]
    %v1712 = vld [vmem:[#allocation8 + $0x18] sm:$0xff]
    %v1713 = vld [vmem:[#allocation8 + $0x20] sm:$0xff]
    %v1714 = vld [vmem:[#allocation8 + $0x28] sm:$0xff]
    %v1715 = vld [vmem:[#allocation8 + $0x30] sm:$0xff]
    %v1716 = vld [vmem:[#allocation8 + $0x38] sm:$0xff]
    %v1717 = vld [vmem:[#allocation8 + $0x40] sm:$0xff]
    %v1718 = vld [vmem:[#allocation8 + $0x48] sm:$0xff]
    %v1719 = vld [vmem:[#allocation8 + $0x50] sm:$0xff]
    %v1720 = vld [vmem:[#allocation8 + $0x58] sm:$0xff]
    %v1721 = vld [vmem:[#allocation8 + $0x60] sm:$0xff]
    %v1722 = vld [vmem:[#allocation8 + $0x68] sm:$0xff]
    %v1723 = vld [vmem:[#allocation8 + $0x70] sm:$0xff]
    %v1724 = vld [vmem:[#allocation8 + $0x78] sm:$0xff]
    %v1725 = vld [vmem:[#allocation8 + $0x80] sm:$0xff]
    %v1726 = vld [vmem:[#allocation8 + $0x88] sm:$0xff]
    %v1727 = vld [vmem:[#allocation8 + $0x90] sm:$0xff]
    %v1728 = vld [vmem:[#allocation8 + $0x98] sm:$0xff]
    %v1729 = vld [vmem:[#allocation8 + $0xa0] sm:$0xff]
    %v1730 = vld [vmem:[#allocation8 + $0xa8] sm:$0xff]
    %v1731 = vld [vmem:[#allocation8 + $0xb0] sm:$0xff]
    %v1732 = vld [vmem:[#allocation8 + $0xb8] sm:$0xff]
    %v1733 = vld [vmem:[#allocation8 + $0xc0] sm:$0xff]
    %v1734 = vld [vmem:[#allocation8 + $0xc8] sm:$0xff]
    %v1735 = vld [vmem:[#allocation8 + $0xd0] sm:$0xff]
    %v1736 = vld [vmem:[#allocation8 + $0xd8] sm:$0xff]
    %v1737 = vld [vmem:[#allocation8 + $0xe0] sm:$0xff]
    %v1738 = vld [vmem:[#allocation8 + $0xe8] sm:$0xff]
    %v1739 = vld [vmem:[#allocation8 + $0xf0] sm:$0xff]
    %v1740 = vld [vmem:[#allocation8 + $0xf8] sm:$0xff]
    %v1741 = vld [vmem:[#allocation8 + $0x100] sm:$0xff]
    %v1742 = vld [vmem:[#allocation8 + $0x108] sm:$0xff]
    %v1743 = vld [vmem:[#allocation8 + $0x110] sm:$0xff]
    %v1744 = vld [vmem:[#allocation8 + $0x118] sm:$0xff]
    %v1745 = vld [vmem:[#allocation8 + $0x120] sm:$0xff]
    %v1746 = vld [vmem:[#allocation8 + $0x128] sm:$0xff]
    %v1747 = vld [vmem:[#allocation8 + $0x130] sm:$0xff]
    %v1748 = vld [vmem:[#allocation8 + $0x138] sm:$0xff]
    %v1749 = vld [vmem:[#allocation8 + $0x140] sm:$0xff]
    %v1750 = vld [vmem:[#allocation8 + $0x148] sm:$0xff]
    %v1751 = vld [vmem:[#allocation8 + $0x150] sm:$0xff]
    %v1752 = vld [vmem:[#allocation8 + $0x158] sm:$0xff]
    %v1753 = vld [vmem:[#allocation8 + $0x160] sm:$0xff]
    %v1754 = vld [vmem:[#allocation8 + $0x168] sm:$0xff]
    %v1755 = vld [vmem:[#allocation8 + $0x170] sm:$0xff]
    %v1756 = vld [vmem:[#allocation8 + $0x178] sm:$0xff]
    %v1757 = vld [vmem:[#allocation8 + $0x180] sm:$0xff]
    %v1758 = vld [vmem:[#allocation8 + $0x188] sm:$0xff]
    %v1759 = vld [vmem:[#allocation8 + $0x190] sm:$0xff]
    %v1760 = vld [vmem:[#allocation8 + $0x198] sm:$0xff]
    %v1761 = vld [vmem:[#allocation8 + $0x1a0] sm:$0xff]
    %v1762 = vld [vmem:[#allocation8 + $0x1a8] sm:$0xff]
    %v1763 = vld [vmem:[#allocation8 + $0x1b0] sm:$0xff]
    %v1764 = vld [vmem:[#allocation8 + $0x1b8] sm:$0xff]
    %v1765 = vld [vmem:[#allocation8 + $0x1c0] sm:$0xff]
    %v1766 = vld [vmem:[#allocation8 + $0x1c8] sm:$0xff]
    %v1767 = vld [vmem:[#allocation8 + $0x1d0] sm:$0xff]
    %v1768 = vld [vmem:[#allocation8 + $0x1d8] sm:$0xff]
    %v1769 = vld [vmem:[#allocation8 + $0x1e0] sm:$0xff]
    %v1770 = vld [vmem:[#allocation8 + $0x1e8] sm:$0xff]
    %v1771 = vld [vmem:[#allocation8 + $0x1f0] sm:$0xff]
    %v1772 = vld [vmem:[#allocation8 + $0x1f8] sm:$0xff]
    %v1773 = vld [vmem:[%s4] sm:$0x3]
    %v1775 = vperm.slane %v1773, 0
    %v1776 = vperm.slane %v1773, 1
    %v1843 = vunpack.c.l.b16 %v1709
    %v1844 = vunpack.c.h.b16 %v1709
    %v1845 = vunpack.c.l.b16 %v1710
    %v1846 = vunpack.c.h.b16 %v1710
    %v1847 = vunpack.c.l.b16 %v1711
    %v1848 = vunpack.c.h.b16 %v1711
    %v1849 = vunpack.c.l.b16 %v1712
    %v1850 = vunpack.c.h.b16 %v1712
    %v1851 = vunpack.c.l.b16 %v1713
    %v1852 = vunpack.c.h.b16 %v1713
    %v1853 = vunpack.c.l.b16 %v1714
    %v1854 = vunpack.c.h.b16 %v1714
    %v1855 = vunpack.c.l.b16 %v1715
    %v1856 = vunpack.c.h.b16 %v1715
    %v1857 = vunpack.c.l.b16 %v1716
    %v1858 = vunpack.c.h.b16 %v1716
    %v1859 = vunpack.c.l.b16 %v1717
    %v1860 = vunpack.c.h.b16 %v1717
    %v1861 = vunpack.c.l.b16 %v1718
    %v1862 = vunpack.c.h.b16 %v1718
    %v1863 = vunpack.c.l.b16 %v1719
    %v1864 = vunpack.c.h.b16 %v1719
    %v1865 = vunpack.c.l.b16 %v1720
    %v1866 = vunpack.c.h.b16 %v1720
    %v1867 = vunpack.c.l.b16 %v1721
    %v1868 = vunpack.c.h.b16 %v1721
    %v1869 = vunpack.c.l.b16 %v1722
    %v1870 = vunpack.c.h.b16 %v1722
    %v1871 = vunpack.c.l.b16 %v1723
    %v1872 = vunpack.c.h.b16 %v1723
    %v1873 = vunpack.c.l.b16 %v1724
    %v1874 = vunpack.c.h.b16 %v1724
    %v1875 = vunpack.c.l.b16 %v1725
    %v1876 = vunpack.c.h.b16 %v1725
    %v1877 = vunpack.c.l.b16 %v1726
    %v1878 = vunpack.c.h.b16 %v1726
    %v1879 = vunpack.c.l.b16 %v1727
    %v1880 = vunpack.c.h.b16 %v1727
    %v1881 = vunpack.c.l.b16 %v1728
    %v1882 = vunpack.c.h.b16 %v1728
    %v1883 = vunpack.c.l.b16 %v1729
    %v1884 = vunpack.c.h.b16 %v1729
    %v1885 = vunpack.c.l.b16 %v1730
    %v1886 = vunpack.c.h.b16 %v1730
    %v1887 = vunpack.c.l.b16 %v1731
    %v1888 = vunpack.c.h.b16 %v1731
    %v1889 = vunpack.c.l.b16 %v1732
    %v1890 = vunpack.c.h.b16 %v1732
    %v1891 = vunpack.c.l.b16 %v1733
    %v1892 = vunpack.c.h.b16 %v1733
    %v1893 = vunpack.c.l.b16 %v1734
    %v1894 = vunpack.c.h.b16 %v1734
    %v1895 = vunpack.c.l.b16 %v1735
    %v1896 = vunpack.c.h.b16 %v1735
    %v1897 = vunpack.c.l.b16 %v1736
    %v1898 = vunpack.c.h.b16 %v1736
    %v1899 = vunpack.c.l.b16 %v1737
    %v1900 = vunpack.c.h.b16 %v1737
    %v1901 = vunpack.c.l.b16 %v1738
    %v1902 = vunpack.c.h.b16 %v1738
    %v1903 = vunpack.c.l.b16 %v1739
    %v1904 = vunpack.c.h.b16 %v1739
    %v1905 = vunpack.c.l.b16 %v1740
    %v1906 = vunpack.c.h.b16 %v1740
    %v1907 = vunpack.c.l.b16 %v1741
    %v1908 = vunpack.c.h.b16 %v1741
    %v1909 = vunpack.c.l.b16 %v1742
    %v1910 = vunpack.c.h.b16 %v1742
    %v1911 = vunpack.c.l.b16 %v1743
    %v1912 = vunpack.c.h.b16 %v1743
    %v1913 = vunpack.c.l.b16 %v1744
    %v1914 = vunpack.c.h.b16 %v1744
    %v1915 = vunpack.c.l.b16 %v1745
    %v1916 = vunpack.c.h.b16 %v1745
    %v1917 = vunpack.c.l.b16 %v1746
    %v1918 = vunpack.c.h.b16 %v1746
    %v1919 = vunpack.c.l.b16 %v1747
    %v1920 = vunpack.c.h.b16 %v1747
    %v1921 = vunpack.c.l.b16 %v1748
    %v1922 = vunpack.c.h.b16 %v1748
    %v1923 = vunpack.c.l.b16 %v1749
    %v1924 = vunpack.c.h.b16 %v1749
    %v1925 = vunpack.c.l.b16 %v1750
    %v1926 = vunpack.c.h.b16 %v1750
    %v1927 = vunpack.c.l.b16 %v1751
    %v1928 = vunpack.c.h.b16 %v1751
    %v1929 = vunpack.c.l.b16 %v1752
    %v1930 = vunpack.c.h.b16 %v1752
    %v1931 = vunpack.c.l.b16 %v1753
    %v1932 = vunpack.c.h.b16 %v1753
    %v1933 = vunpack.c.l.b16 %v1754
    %v1934 = vunpack.c.h.b16 %v1754
    %v1935 = vunpack.c.l.b16 %v1755
    %v1936 = vunpack.c.h.b16 %v1755
    %v1937 = vunpack.c.l.b16 %v1756
    %v1938 = vunpack.c.h.b16 %v1756
    %v1939 = vunpack.c.l.b16 %v1757
    %v1940 = vunpack.c.h.b16 %v1757
    %v1941 = vunpack.c.l.b16 %v1758
    %v1942 = vunpack.c.h.b16 %v1758
    %v1943 = vunpack.c.l.b16 %v1759
    %v1944 = vunpack.c.h.b16 %v1759
    %v1945 = vunpack.c.l.b16 %v1760
    %v1946 = vunpack.c.h.b16 %v1760
    %v1947 = vunpack.c.l.b16 %v1761
    %v1948 = vunpack.c.h.b16 %v1761
    %v1949 = vunpack.c.l.b16 %v1762
    %v1950 = vunpack.c.h.b16 %v1762
    %v1951 = vunpack.c.l.b16 %v1763
    %v1952 = vunpack.c.h.b16 %v1763
    %v1953 = vunpack.c.l.b16 %v1764
    %v1954 = vunpack.c.h.b16 %v1764
    %v1955 = vunpack.c.l.b16 %v1765
    %v1956 = vunpack.c.h.b16 %v1765
    %v1957 = vunpack.c.l.b16 %v1766
    %v1958 = vunpack.c.h.b16 %v1766
    %v1959 = vunpack.c.l.b16 %v1767
    %v1960 = vunpack.c.h.b16 %v1767
    %v1961 = vunpack.c.l.b16 %v1768
    %v1962 = vunpack.c.h.b16 %v1768
    %v1963 = vunpack.c.l.b16 %v1769
    %v1964 = vunpack.c.h.b16 %v1769
    %v1965 = vunpack.c.l.b16 %v1770
    %v1966 = vunpack.c.h.b16 %v1770
    %v1967 = vunpack.c.l.b16 %v1771
    %v1968 = vunpack.c.h.b16 %v1771
    %v1969 = vunpack.c.l.b16 %v1772
    %v1970 = vunpack.c.h.b16 %v1772
    %v1971 = vpack.c.b16 %v1845, %v1843
    %v1972 = vpack.c.b16 %v1846, %v1844
    %v1973 = vpack.c.b16 %v1849, %v1847
    %v1974 = vpack.c.b16 %v1850, %v1848
    %v1975 = vpack.c.b16 %v1853, %v1851
    %v1976 = vpack.c.b16 %v1854, %v1852
    %v1977 = vpack.c.b16 %v1857, %v1855
    %v1978 = vpack.c.b16 %v1858, %v1856
    %v1979 = vpack.c.b16 %v1861, %v1859
    %v1980 = vpack.c.b16 %v1862, %v1860
    %v1981 = vpack.c.b16 %v1865, %v1863
    %v1982 = vpack.c.b16 %v1866, %v1864
    %v1983 = vpack.c.b16 %v1869, %v1867
    %v1984 = vpack.c.b16 %v1870, %v1868
    %v1985 = vpack.c.b16 %v1873, %v1871
    %v1986 = vpack.c.b16 %v1874, %v1872
    %v1987 = vpack.c.b16 %v1877, %v1875
    %v1988 = vpack.c.b16 %v1878, %v1876
    %v1989 = vpack.c.b16 %v1881, %v1879
    %v1990 = vpack.c.b16 %v1882, %v1880
    %v1991 = vpack.c.b16 %v1885, %v1883
    %v1992 = vpack.c.b16 %v1886, %v1884
    %v1993 = vpack.c.b16 %v1889, %v1887
    %v1994 = vpack.c.b16 %v1890, %v1888
    %v1995 = vpack.c.b16 %v1893, %v1891
    %v1996 = vpack.c.b16 %v1894, %v1892
    %v1997 = vpack.c.b16 %v1897, %v1895
    %v1998 = vpack.c.b16 %v1898, %v1896
    %v1999 = vpack.c.b16 %v1901, %v1899
    %v2000 = vpack.c.b16 %v1902, %v1900
    %v2001 = vpack.c.b16 %v1905, %v1903
    %v2002 = vpack.c.b16 %v1906, %v1904
    %v2003 = vpack.c.b16 %v1909, %v1907
    %v2004 = vpack.c.b16 %v1910, %v1908
    %v2005 = vpack.c.b16 %v1913, %v1911
    %v2006 = vpack.c.b16 %v1914, %v1912
    %v2007 = vpack.c.b16 %v1917, %v1915
    %v2008 = vpack.c.b16 %v1918, %v1916
    %v2009 = vpack.c.b16 %v1921, %v1919
    %v2010 = vpack.c.b16 %v1922, %v1920
    %v2011 = vpack.c.b16 %v1925, %v1923
    %v2012 = vpack.c.b16 %v1926, %v1924
    %v2013 = vpack.c.b16 %v1929, %v1927
    %v2014 = vpack.c.b16 %v1930, %v1928
    %v2015 = vpack.c.b16 %v1933, %v1931
    %v2016 = vpack.c.b16 %v1934, %v1932
    %v2017 = vpack.c.b16 %v1937, %v1935
    %v2018 = vpack.c.b16 %v1938, %v1936
    %v2019 = vpack.c.b16 %v1941, %v1939
    %v2020 = vpack.c.b16 %v1942, %v1940
    %v2021 = vpack.c.b16 %v1945, %v1943
    %v2022 = vpack.c.b16 %v1946, %v1944
    %v2023 = vpack.c.b16 %v1949, %v1947
    %v2024 = vpack.c.b16 %v1950, %v1948
    %v2025 = vpack.c.b16 %v1953, %v1951
    %v2026 = vpack.c.b16 %v1954, %v1952
    %v2027 = vpack.c.b16 %v1957, %v1955
    %v2028 = vpack.c.b16 %v1958, %v1956
    %v2029 = vpack.c.b16 %v1961, %v1959
    %v2030 = vpack.c.b16 %v1962, %v1960
    %v2031 = vpack.c.b16 %v1965, %v1963
    %v2032 = vpack.c.b16 %v1966, %v1964
    %v2033 = vpack.c.b16 %v1969, %v1967
    %v2034 = vpack.c.b16 %v1970, %v1968
    %2099 = vmatpush.bf16.msra.mxu0 %v1985
    %2100 = vmatpush.bf16.msra.mxu0 %v1983
    %2101 = vmatpush.bf16.msra.mxu0 %v1981
    %2102 = vmatpush.bf16.msra.mxu0 %v1979
    %2103 = vmatpush.bf16.msra.mxu0 %v1977
    %2104 = vmatpush.bf16.msra.mxu0 %v1975
    %2105 = vmatpush.bf16.msra.mxu0 %v1973
    %2106 = vmatpush.bf16.msra.mxu0 %v1971
    %2107 = vmatmul.bf16.gmra.mxu0 %v1705
    %v2108 = vpop.f32.mrf.mxu0
    %v2109 = vadd.f32 %v1775, %v2108
    %v2110 = vpop.f32.mrf.mxu0
    %2111 = vdwg.mxu0
    %2112 = vmatpush.bf16.msra.mxu0 %v2001
    %2113 = vmatpush.bf16.msra.mxu0 %v1999
    %2114 = vmatpush.bf16.msra.mxu0 %v1997
    %2115 = vmatpush.bf16.msra.mxu0 %v1995
    %2116 = vmatpush.bf16.msra.mxu0 %v1993
    %2117 = vmatpush.bf16.msra.mxu0 %v1991
    %2118 = vmatpush.bf16.msra.mxu0 %v1989
    %2119 = vmatpush.bf16.msra.mxu0 %v1987
    %2120 = vmatmul.bf16.gmra.mxu0 %v1706
    %v2121 = vpop.f32.mrf.mxu0
    %v2122 = vadd.f32 %v2109, %v2121
    %v2123 = vpop.f32.mrf.mxu0
    %2124 = vdwg.mxu0
    %2125 = vmatpush.bf16.msra.mxu0 %v2017
    %2126 = vmatpush.bf16.msra.mxu0 %v2015
    %2127 = vmatpush.bf16.msra.mxu0 %v2013
    %2128 = vmatpush.bf16.msra.mxu0 %v2011
    %2129 = vmatpush.bf16.msra.mxu0 %v2009
    %2130 = vmatpush.bf16.msra.mxu0 %v2007
    %2131 = vmatpush.bf16.msra.mxu0 %v2005
    %2132 = vmatpush.bf16.msra.mxu0 %v2003
    %2133 = vmatmul.bf16.gmra.mxu0 %v1707
    %v2134 = vpop.f32.mrf.mxu0
    %v2135 = vadd.f32 %v2122, %v2134
    %v2136 = vpop.f32.mrf.mxu0
    %2137 = vdwg.mxu0
    %2138 = vmatpush.bf16.msra.mxu0 %v2033
    %2139 = vmatpush.bf16.msra.mxu0 %v2031
    %2140 = vmatpush.bf16.msra.mxu0 %v2029
    %2141 = vmatpush.bf16.msra.mxu0 %v2027
    %2142 = vmatpush.bf16.msra.mxu0 %v2025
    %2143 = vmatpush.bf16.msra.mxu0 %v2023
    %2144 = vmatpush.bf16.msra.mxu0 %v2021
    %2145 = vmatpush.bf16.msra.mxu0 %v2019
    %2146 = vmatmul.bf16.gmra.mxu0 %v1708
    %v2147 = vpop.f32.mrf.mxu0
    %v2148 = vadd.f32 %v2135, %v2147
    %v2149 = vpop.f32.mrf.mxu0
    %2150 = vdwg.mxu0
    %2151 = vmatpush.bf16.msra.mxu0 %v1986
    %2152 = vmatpush.bf16.msra.mxu0 %v1984
    %2153 = vmatpush.bf16.msra.mxu0 %v1982
    %2154 = vmatpush.bf16.msra.mxu0 %v1980
    %2155 = vmatpush.bf16.msra.mxu0 %v1978
    %2156 = vmatpush.bf16.msra.mxu0 %v1976
    %2157 = vmatpush.bf16.msra.mxu0 %v1974
    %2158 = vmatpush.bf16.msra.mxu0 %v1972
    %2159 = vmatmul.bf16.gmra.mxu0 %v1705
    %v2160 = vpop.f32.mrf.mxu0
    %v2161 = vadd.f32 %v1776, %v2160
    %v2162 = vpop.f32.mrf.mxu0
    %2163 = vdwg.mxu0
    %2164 = vmatpush.bf16.msra.mxu0 %v2002
    %2165 = vmatpush.bf16.msra.mxu0 %v2000
    %2166 = vmatpush.bf16.msra.mxu0 %v1998
    %2167 = vmatpush.bf16.msra.mxu0 %v1996
    %2168 = vmatpush.bf16.msra.mxu0 %v1994
    %2169 = vmatpush.bf16.msra.mxu0 %v1992
    %2170 = vmatpush.bf16.msra.mxu0 %v1990
    %2171 = vmatpush.bf16.msra.mxu0 %v1988
    %2172 = vmatmul.bf16.gmra.mxu0 %v1706
    %v2173 = vpop.f32.mrf.mxu0
    %v2174 = vadd.f32 %v2161, %v2173
    %v2175 = vpop.f32.mrf.mxu0
    %2176 = vdwg.mxu0
    %2177 = vmatpush.bf16.msra.mxu0 %v2018
    %2178 = vmatpush.bf16.msra.mxu0 %v2016
    %2179 = vmatpush.bf16.msra.mxu0 %v2014
    %2180 = vmatpush.bf16.msra.mxu0 %v2012
    %2181 = vmatpush.bf16.msra.mxu0 %v2010
    %2182 = vmatpush.bf16.msra.mxu0 %v2008
    %2183 = vmatpush.bf16.msra.mxu0 %v2006
    %2184 = vmatpush.bf16.msra.mxu0 %v2004
    %2185 = vmatmul.bf16.gmra.mxu0 %v1707
    %v2186 = vpop.f32.mrf.mxu0
    %v2187 = vadd.f32 %v2174, %v2186
    %v2188 = vpop.f32.mrf.mxu0
    %2189 = vdwg.mxu0
    %2190 = vmatpush.bf16.msra.mxu0 %v2034
    %2191 = vmatpush.bf16.msra.mxu0 %v2032
    %2192 = vmatpush.bf16.msra.mxu0 %v2030
    %2193 = vmatpush.bf16.msra.mxu0 %v2028
    %2194 = vmatpush.bf16.msra.mxu0 %v2026
    %2195 = vmatpush.bf16.msra.mxu0 %v2024
    %2196 = vmatpush.bf16.msra.mxu0 %v2022
    %2197 = vmatpush.bf16.msra.mxu0 %v2020
    %2198 = vmatmul.bf16.gmra.mxu0 %v1708
    %v2199 = vpop.f32.mrf.mxu0
    %v2200 = vadd.f32 %v2187, %v2199
    %v2201 = vpop.f32.mrf.mxu0
    %2202 = vdwg.mxu0
    %v2203 = vpack.c.bf16 %v2200, %v2148
    %v2204 = vunpack.c.l.bf16 %v2203
    %v2205 = vunpack.c.h.bf16 %v2203
    %v2206 = vmul.f32 %v2204, 0.20019531
    %v2207 = vmul.f32 %v2205, 0.20019531
    %v2208 = vpack.c.bf16 %v2207, %v2206
    %v2209 = vunpack.c.l.bf16 %v2208
    %v2210 = vunpack.c.h.bf16 %v2208
    %v2211 = vmax.f32 %v2204, %v2209
    %v2212 = vmax.f32 %v2205, %v2210
    %v2213 = vpack.c.bf16 %v2211, %v2211
    %v2214 = vpack.c.bf16 %v2212, %v2212
    %v2215 = vld [vmem:[#allocation10] sm:$0xf]
    %v2216 = vld [vmem:[#allocation10 + $0x4] sm:$0xf]
    %v2217 = vld [vmem:[#allocation10 + $0x8] sm:$0xf]
    %v2218 = vld [vmem:[#allocation10 + $0xc] sm:$0xf]
    %v2219 = vld [vmem:[#allocation10 + $0x10] sm:$0xf]
    %v2220 = vld [vmem:[#allocation10 + $0x14] sm:$0xf]
    %v2221 = vld [vmem:[#allocation10 + $0x18] sm:$0xf]
    %v2222 = vld [vmem:[#allocation10 + $0x1c] sm:$0xf]
    %v2223 = vld [vmem:[#allocation10 + $0x20] sm:$0xf]
    %v2224 = vld [vmem:[#allocation10 + $0x24] sm:$0xf]
    %v2225 = vld [vmem:[#allocation10 + $0x28] sm:$0xf]
    %v2226 = vld [vmem:[#allocation10 + $0x2c] sm:$0xf]
    %v2227 = vld [vmem:[#allocation10 + $0x30] sm:$0xf]
    %v2228 = vld [vmem:[#allocation10 + $0x34] sm:$0xf]
    %v2229 = vld [vmem:[#allocation10 + $0x38] sm:$0xf]
    %v2230 = vld [vmem:[#allocation10 + $0x3c] sm:$0xf]
    %v2231 = vld [vmem:[#allocation10 + $0x40] sm:$0xf]
    %v2232 = vld [vmem:[#allocation10 + $0x44] sm:$0xf]
    %v2233 = vld [vmem:[#allocation10 + $0x48] sm:$0xf]
    %v2234 = vld [vmem:[#allocation10 + $0x4c] sm:$0xf]
    %v2235 = vld [vmem:[#allocation10 + $0x50] sm:$0xf]
    %v2236 = vld [vmem:[#allocation10 + $0x54] sm:$0xf]
    %v2237 = vld [vmem:[#allocation10 + $0x58] sm:$0xf]
    %v2238 = vld [vmem:[#allocation10 + $0x5c] sm:$0xf]
    %v2239 = vld [vmem:[#allocation10 + $0x60] sm:$0xf]
    %v2240 = vld [vmem:[#allocation10 + $0x64] sm:$0xf]
    %v2241 = vld [vmem:[#allocation10 + $0x68] sm:$0xf]
    %v2242 = vld [vmem:[#allocation10 + $0x6c] sm:$0xf]
    %v2243 = vld [vmem:[#allocation10 + $0x70] sm:$0xf]
    %v2244 = vld [vmem:[#allocation10 + $0x74] sm:$0xf]
    %v2245 = vld [vmem:[#allocation10 + $0x78] sm:$0xf]
    %v2246 = vld [vmem:[#allocation10 + $0x7c] sm:$0xf]
    %v2279 = vunpack.c.l.b16 %v2215
    %v2280 = vunpack.c.l.b16 %v2216
    %v2281 = vunpack.c.l.b16 %v2217
    %v2282 = vunpack.c.l.b16 %v2218
    %v2283 = vunpack.c.l.b16 %v2219
    %v2284 = vunpack.c.l.b16 %v2220
    %v2285 = vunpack.c.l.b16 %v2221
    %v2286 = vunpack.c.l.b16 %v2222
    %v2287 = vunpack.c.l.b16 %v2223
    %v2288 = vunpack.c.l.b16 %v2224
    %v2289 = vunpack.c.l.b16 %v2225
    %v2290 = vunpack.c.l.b16 %v2226
    %v2291 = vunpack.c.l.b16 %v2227
    %v2292 = vunpack.c.l.b16 %v2228
    %v2293 = vunpack.c.l.b16 %v2229
    %v2294 = vunpack.c.l.b16 %v2230
    %v2295 = vunpack.c.l.b16 %v2231
    %v2296 = vunpack.c.l.b16 %v2232
    %v2297 = vunpack.c.l.b16 %v2233
    %v2298 = vunpack.c.l.b16 %v2234
    %v2299 = vunpack.c.l.b16 %v2235
    %v2300 = vunpack.c.l.b16 %v2236
    %v2301 = vunpack.c.l.b16 %v2237
    %v2302 = vunpack.c.l.b16 %v2238
    %v2303 = vunpack.c.l.b16 %v2239
    %v2304 = vunpack.c.l.b16 %v2240
    %v2305 = vunpack.c.l.b16 %v2241
    %v2306 = vunpack.c.l.b16 %v2242
    %v2307 = vunpack.c.l.b16 %v2243
    %v2308 = vunpack.c.l.b16 %v2244
    %v2309 = vunpack.c.l.b16 %v2245
    %v2310 = vunpack.c.l.b16 %v2246
    %v2311 = vpack.c.b16 %v2280, %v2279
    %v2312 = vpack.c.b16 %v2282, %v2281
    %v2313 = vpack.c.b16 %v2284, %v2283
    %v2314 = vpack.c.b16 %v2286, %v2285
    %v2315 = vpack.c.b16 %v2288, %v2287
    %v2316 = vpack.c.b16 %v2290, %v2289
    %v2317 = vpack.c.b16 %v2292, %v2291
    %v2318 = vpack.c.b16 %v2294, %v2293
    %v2319 = vpack.c.b16 %v2296, %v2295
    %v2320 = vpack.c.b16 %v2298, %v2297
    %v2321 = vpack.c.b16 %v2300, %v2299
    %v2322 = vpack.c.b16 %v2302, %v2301
    %v2323 = vpack.c.b16 %v2304, %v2303
    %v2324 = vpack.c.b16 %v2306, %v2305
    %v2325 = vpack.c.b16 %v2308, %v2307
    %v2326 = vpack.c.b16 %v2310, %v2309
    %2343 = vmatpush.bf16.msra.mxu0 %v2318
    %2344 = vmatpush.bf16.msra.mxu0 %v2317
    %2345 = vmatpush.bf16.msra.mxu0 %v2316
    %2346 = vmatpush.bf16.msra.mxu0 %v2315
    %2347 = vmatpush.bf16.msra.mxu0 %v2314
    %2348 = vmatpush.bf16.msra.mxu0 %v2313
    %2349 = vmatpush.bf16.msra.mxu0 %v2312
    %2350 = vmatpush.bf16.msra.mxu0 %v2311
    %2351 = vmatmul.bf16.gmra.mxu0 %v2213
    %v2352 = vpop.f32.mrf.mxu0
    %v2353 = vadd.f32 0.0, %v2352
    %v2354 = vpop.f32.mrf.mxu0
    %2355 = vdwg.mxu0
    %2356 = vmatpush.bf16.msra.mxu0 %v2326
    %2357 = vmatpush.bf16.msra.mxu0 %v2325
    %2358 = vmatpush.bf16.msra.mxu0 %v2324
    %2359 = vmatpush.bf16.msra.mxu0 %v2323
    %2360 = vmatpush.bf16.msra.mxu0 %v2322
    %2361 = vmatpush.bf16.msra.mxu0 %v2321
    %2362 = vmatpush.bf16.msra.mxu0 %v2320
    %2363 = vmatpush.bf16.msra.mxu0 %v2319
    %2364 = vmatmul.bf16.gmra.mxu0 %v2214
    %v2365 = vpop.f32.mrf.mxu0
    %v2366 = vadd.f32 %v2353, %v2365
    %v2367 = vpop.f32.mrf.mxu0
    %2368 = vdwg.mxu0
    %v2369 = vld [vmem:[#allocation2] sm:$0x1]
    %v2371 = vperm.slane %v2369, 0
    %v2373 = vadd.f32 %v2366, %v2371
    %v2374 = vsub.f32 0.0, %v2373
    %v2375 = vmul.f32 %v2374, 1.442695
    %v2376 = vpow.pop %v2375
    %v2377 = vadd.f32 %v2376, 1.0
    %v2378 = vrcp.pop %v2377
    %vm2379 = vcmask 1024
    %2380 = vst.msk [vmem:[%s7] sm:$0x3] %vm2379, %v2378
    // Predicated region
    $region50: #{tpu_custom_call.1} parent=1 // pred_check
      _
    $region51: #{tpu_custom_call.1} parent=1 // pred_check_branch
      %2382 = sbr.rel (0) target = $region53
    $region52: #{tpu_custom_call.1} parent=1 // pred_region
      _
    $region53: #{tpu_custom_call.1} parent=1 // pred_fallthru
      _
    // Predicated region
    $region54: #{tpu_custom_call.1} parent=1 // pred_check
      _
    $region55: #{tpu_custom_call.1} parent=1 // pred_check_branch
      %2384 = sbr.rel (0) target = $region57
    $region56: #{tpu_custom_call.1} parent=1 // pred_region
      _
    $region57: #{tpu_custom_call.1} parent=1 // pred_fallthru
      _
    %2385 = vsyncpa [#allocation4], 1
    %2386 = vsyncpa [#allocation6], 1
    %2387 = vsyncpa [#allocation9], 1

</llo_original>
